<compile_context>
chip_gen: v7x
topology: tpu7x:2x2x1
jax: 0.10.0
libtpu: 0.0.40
codegen_flags: <defaults>
</compile_context>

<pallas_src>
import functools

import numpy as np
import jax
import jax.numpy as jnp
from jax.experimental import pallas as pl
from jax.experimental.pallas import tpu as pltpu

NB_LAYERS = 4  # nb_layers of _ConvNet_


def _convnet_kernel(x_ref, bnd_ref, r0_ref, r2_ref, c_ref, o_ref, *, nb_layers):
    # x_ref, bnd_ref, o_ref : (H, W) f32 blocks (one batch sample per grid step)
    # r0_ref, r2_ref        : (H, H) f32 0/1 vertical shift matrices
    # c_ref                 : (3*nb_layers, W, W) f32 tri-diagonal horizontal-mix matrices
    acc = x_ref[...]
    bnd = bnd_ref[...]          # loaded once, reused across all layers
    r0 = r0_ref[...]
    r2 = r2_ref[...]
    for l in range(nb_layers):  # static unroll; nb_layers is a small compile-time int
        y0 = jnp.dot(acc, c_ref[3 * l + 0], preferred_element_type=jnp.float32)
        y1 = jnp.dot(acc, c_ref[3 * l + 1], preferred_element_type=jnp.float32)
        y2 = jnp.dot(acc, c_ref[3 * l + 2], preferred_element_type=jnp.float32)
        conv = (y1
                + jnp.dot(r0, y0, preferred_element_type=jnp.float32)
                + jnp.dot(r2, y2, preferred_element_type=jnp.float32))
        acc = conv * bnd
    o_ref[...] = acc


def _banded_matrices(weights, H, W):
    """Structured matrices realizing a zero-padded 3x3 cross-correlation.

    conv(x)[i, j] = sum_{a,b} w[a, b] * x[i+a-1, j+b-1]          (zeros outside)
                  = (R0 @ (x @ C0) + (x @ C1) + R2 @ (x @ C2))[i, j]
    with  C_a = sum_b w[a, b] * eye(W, k=1-b)   (tri-diagonal, (W, W))
          R0  = eye(H, k=-1),  R2 = eye(H, k=+1) (vertical shifts, (H, H)).
    """
    eyes = np.stack([np.eye(W, k=1 - b) for b in range(3)]).astype(np.float32)  # (3,W,W)
    c = jnp.einsum("lab,bij->laij", weights.astype(jnp.float32), jnp.asarray(eyes))
    c = c.reshape(-1, W, W)  # (3*L, W, W); layer l, kernel row a -> index 3*l + a
    r0 = jnp.asarray(np.eye(H, k=-1, dtype=np.float32))
    r2 = jnp.asarray(np.eye(H, k=+1, dtype=np.float32))
    return r0, r2, c


def convnet_forward(x, boundary, weights):
    """x: (N, 1, H, W) f32; boundary broadcastable to x; weights: (nb_layers, 3, 3)."""
    N, C, H, W = x.shape
    assert C == 1
    L = int(weights.shape[0])

    x3 = x.reshape(N, H, W).astype(jnp.float32)

    bnd = jnp.asarray(boundary, jnp.float32)
    bnd = jnp.broadcast_to(bnd, (bnd.shape[0] if bnd.ndim == 4 else 1, 1, H, W))
    Nb = int(bnd.shape[0])          # 1 (mask shared across batch) or N (per-sample mask)
    bnd3 = bnd.reshape(Nb, H, W)
    bnd_map = (lambda n: (n, 0, 0)) if Nb == N else (lambda n: (0, 0, 0))

    r0, r2, cmats = _banded_matrices(jnp.asarray(weights, jnp.float32), H, W)

    out3 = pl.pallas_call(
        functools.partial(_convnet_kernel, nb_layers=L),
        out_shape=jax.ShapeDtypeStruct((N, H, W), jnp.float32),
        grid=(N,),
        in_specs=[
            pl.BlockSpec((None, H, W), lambda n: (n, 0, 0)),    # x: one sample per step
            pl.BlockSpec((None, H, W), bnd_map),                # boundary (no N broadcast)
            pl.BlockSpec((H, H), lambda n: (0, 0)),             # R0 (resident)
            pl.BlockSpec((H, H), lambda n: (0, 0)),             # R2 (resident)
            pl.BlockSpec((3 * L, W, W), lambda n: (0, 0, 0)),   # banded C matrices
        ],
        out_specs=pl.BlockSpec((None, H, W), lambda n: (n, 0, 0)),
        compiler_params=pltpu.CompilerParams(
            dimension_semantics=("parallel",)),                 # v7x: shard batch on 2 TCs
    )(x3, bnd3, r0, r2, cmats)
    return out3.reshape(N, 1, H, W)


def reference_forward_np(x, boundary, weights):
    """Pure-numpy reference: repeated zero-padded 3x3 cross-correlation * boundary."""
    x = np.asarray(x, dtype=np.float32)
    bnd = np.broadcast_to(np.asarray(boundary, dtype=np.float32), x.shape)
    w = np.asarray(weights, dtype=np.float32)
    N, C, H, W = x.shape
    acc = x
    for l in range(w.shape[0]):
        xp = np.zeros((N, C, H + 2, W + 2), np.float32)
        xp[:, :, 1:-1, 1:-1] = acc
        out = np.zeros_like(acc)
        for a in range(3):
            for b in range(3):
                out += w[l, a, b] * xp[:, :, a:a + H, b:b + W]
        acc = out * bnd
    return acc


if __name__ == "__main__":
    key = jax.random.PRNGKey(0)
    k_x, k_w = jax.random.split(key)

    N, H, W = 2, 16, 16
    x = jax.random.normal(k_x, (N, 1, H, W), dtype=jnp.float32)

    # boundary mask: zeros on the domain border, ones in the interior (typical nnpde usage)
    bmask = np.zeros((1, 1, H, W), np.float32)
    bmask[:, :, 1:-1, 1:-1] = 1.0
    boundary = jnp.asarray(bmask)

    # Conv2d(1, 1, 3, bias=False) default init ~ U(-1/sqrt(fan_in), 1/sqrt(fan_in)), fan_in = 9
    weights = jax.random.uniform(
        k_w, (NB_LAYERS, 3, 3), dtype=jnp.float32, minval=-1.0 / 3.0, maxval=1.0 / 3.0
    )

    out = convnet_forward(x, boundary, weights)
    out = jax.block_until_ready(out)

    ref = reference_forward_np(x, boundary, weights)
    assert out.shape == ref.shape == (N, 1, H, W)
    max_err = float(np.max(np.abs(np.asarray(out) - ref)))
    assert max_err < 2e-3, f"max abs error {max_err}"
    print("KERNEL_OK")
</pallas_src>

<mosaic_0001>
module attributes {stable_mosaic.version = 11 : i64} {
  func.func @_convnet_kernel(%arg0: i32, %arg1: memref<1x16x16xf32, #tpu.memory_space<vmem>>, %arg2: memref<1x16x16xf32, #tpu.memory_space<vmem>>, %arg3: memref<16x16xf32, #tpu.memory_space<vmem>>, %arg4: memref<16x16xf32, #tpu.memory_space<vmem>>, %arg5: memref<12x16x16xf32, #tpu.memory_space<vmem>>, %arg6: memref<1x16x16xf32, #tpu.memory_space<vmem>>) attributes {dimension_semantics = [#tpu.dimension_semantics<parallel>], iteration_bounds = array<i64: 2>, scalar_prefetch = 0 : i64, scratch_operands = 0 : i64, tpu.core_type = #tpu.core_type<tc>, window_params = [{transform_indices = @transform_0, window_bounds = array<i64: 1, 16, 16>}, {pipeline_mode = #tpu.pipeline_mode<synchronous>, transform_indices = @transform_1, window_bounds = array<i64: 1, 16, 16>}, {pipeline_mode = #tpu.pipeline_mode<synchronous>, transform_indices = @transform_2, window_bounds = array<i64: 16, 16>}, {pipeline_mode = #tpu.pipeline_mode<synchronous>, transform_indices = @transform_3, window_bounds = array<i64: 16, 16>}, {pipeline_mode = #tpu.pipeline_mode<synchronous>, transform_indices = @transform_4, window_bounds = array<i64: 12, 16, 16>}, {transform_indices = @transform_5, window_bounds = array<i64: 1, 16, 16>}]} {
    %c0 = arith.constant 0 : index
    %c0_0 = arith.constant 0 : index
    %c0_1 = arith.constant 0 : index
    %0 = vector.load %arg1[%c0, %c0_0, %c0_1] : memref<1x16x16xf32, #tpu.memory_space<vmem>>, vector<1x16x16xf32>
    %1 = vector.shape_cast %0 : vector<1x16x16xf32> to vector<16x16xf32>
    %c0_2 = arith.constant 0 : index
    %c0_3 = arith.constant 0 : index
    %c0_4 = arith.constant 0 : index
    %2 = vector.load %arg2[%c0_2, %c0_3, %c0_4] : memref<1x16x16xf32, #tpu.memory_space<vmem>>, vector<1x16x16xf32>
    %3 = vector.shape_cast %2 : vector<1x16x16xf32> to vector<16x16xf32>
    %c0_5 = arith.constant 0 : index
    %c0_6 = arith.constant 0 : index
    %4 = vector.load %arg3[%c0_5, %c0_6] : memref<16x16xf32, #tpu.memory_space<vmem>>, vector<16x16xf32>
    %c0_7 = arith.constant 0 : index
    %c0_8 = arith.constant 0 : index
    %5 = vector.load %arg4[%c0_7, %c0_8] : memref<16x16xf32, #tpu.memory_space<vmem>>, vector<16x16xf32>
    %c0_9 = arith.constant 0 : index
    %c0_10 = arith.constant 0 : index
    %c0_11 = arith.constant 0 : index
    %6 = vector.load %arg5[%c0_9, %c0_10, %c0_11] : memref<12x16x16xf32, #tpu.memory_space<vmem>>, vector<1x16x16xf32>
    %7 = vector.shape_cast %6 : vector<1x16x16xf32> to vector<16x16xf32>
    %cst = arith.constant dense<0.000000e+00> : vector<16x16xf32>
    %8 = tpu.matmul %1, %7, %cst {dimension_numbers = #tpu.dot_dimension_numbers<[1], [0], [0], [1], [0, 0, 1, 1], [], []>} : vector<16x16xf32>, vector<16x16xf32>, vector<16x16xf32> -> vector<16x16xf32>
    %c1 = arith.constant 1 : index
    %c0_12 = arith.constant 0 : index
    %c0_13 = arith.constant 0 : index
    %9 = vector.load %arg5[%c1, %c0_12, %c0_13] : memref<12x16x16xf32, #tpu.memory_space<vmem>>, vector<1x16x16xf32>
    %10 = vector.shape_cast %9 : vector<1x16x16xf32> to vector<16x16xf32>
    %cst_14 = arith.constant dense<0.000000e+00> : vector<16x16xf32>
    %11 = tpu.matmul %1, %10, %cst_14 {dimension_numbers = #tpu.dot_dimension_numbers<[1], [0], [0], [1], [0, 0, 1, 1], [], []>} : vector<16x16xf32>, vector<16x16xf32>, vector<16x16xf32> -> vector<16x16xf32>
    %c2 = arith.constant 2 : index
    %c0_15 = arith.constant 0 : index
    %c0_16 = arith.constant 0 : index
    %12 = vector.load %arg5[%c2, %c0_15, %c0_16] : memref<12x16x16xf32, #tpu.memory_space<vmem>>, vector<1x16x16xf32>
    %13 = vector.shape_cast %12 : vector<1x16x16xf32> to vector<16x16xf32>
    %cst_17 = arith.constant dense<0.000000e+00> : vector<16x16xf32>
    %14 = tpu.matmul %1, %13, %cst_17 {dimension_numbers = #tpu.dot_dimension_numbers<[1], [0], [0], [1], [0, 0, 1, 1], [], []>} : vector<16x16xf32>, vector<16x16xf32>, vector<16x16xf32> -> vector<16x16xf32>
    %cst_18 = arith.constant dense<0.000000e+00> : vector<16x16xf32>
    %15 = tpu.matmul %4, %8, %cst_18 {dimension_numbers = #tpu.dot_dimension_numbers<[1], [0], [0], [1], [0, 0, 1, 1], [], []>} : vector<16x16xf32>, vector<16x16xf32>, vector<16x16xf32> -> vector<16x16xf32>
    %16 = arith.addf %11, %15 : vector<16x16xf32>
    %cst_19 = arith.constant dense<0.000000e+00> : vector<16x16xf32>
    %17 = tpu.matmul %5, %14, %cst_19 {dimension_numbers = #tpu.dot_dimension_numbers<[1], [0], [0], [1], [0, 0, 1, 1], [], []>} : vector<16x16xf32>, vector<16x16xf32>, vector<16x16xf32> -> vector<16x16xf32>
    %18 = arith.addf %16, %17 : vector<16x16xf32>
    %19 = arith.mulf %18, %3 : vector<16x16xf32>
    %c3 = arith.constant 3 : index
    %c0_20 = arith.constant 0 : index
    %c0_21 = arith.constant 0 : index
    %20 = vector.load %arg5[%c3, %c0_20, %c0_21] : memref<12x16x16xf32, #tpu.memory_space<vmem>>, vector<1x16x16xf32>
    %21 = vector.shape_cast %20 : vector<1x16x16xf32> to vector<16x16xf32>
    %cst_22 = arith.constant dense<0.000000e+00> : vector<16x16xf32>
    %22 = tpu.matmul %19, %21, %cst_22 {dimension_numbers = #tpu.dot_dimension_numbers<[1], [0], [0], [1], [0, 0, 1, 1], [], []>} : vector<16x16xf32>, vector<16x16xf32>, vector<16x16xf32> -> vector<16x16xf32>
    %c4 = arith.constant 4 : index
    %c0_23 = arith.constant 0 : index
    %c0_24 = arith.constant 0 : index
    %23 = vector.load %arg5[%c4, %c0_23, %c0_24] : memref<12x16x16xf32, #tpu.memory_space<vmem>>, vector<1x16x16xf32>
    %24 = vector.shape_cast %23 : vector<1x16x16xf32> to vector<16x16xf32>
    %cst_25 = arith.constant dense<0.000000e+00> : vector<16x16xf32>
    %25 = tpu.matmul %19, %24, %cst_25 {dimension_numbers = #tpu.dot_dimension_numbers<[1], [0], [0], [1], [0, 0, 1, 1], [], []>} : vector<16x16xf32>, vector<16x16xf32>, vector<16x16xf32> -> vector<16x16xf32>
    %c5 = arith.constant 5 : index
    %c0_26 = arith.constant 0 : index
    %c0_27 = arith.constant 0 : index
    %26 = vector.load %arg5[%c5, %c0_26, %c0_27] : memref<12x16x16xf32, #tpu.memory_space<vmem>>, vector<1x16x16xf32>
    %27 = vector.shape_cast %26 : vector<1x16x16xf32> to vector<16x16xf32>
    %cst_28 = arith.constant dense<0.000000e+00> : vector<16x16xf32>
    %28 = tpu.matmul %19, %27, %cst_28 {dimension_numbers = #tpu.dot_dimension_numbers<[1], [0], [0], [1], [0, 0, 1, 1], [], []>} : vector<16x16xf32>, vector<16x16xf32>, vector<16x16xf32> -> vector<16x16xf32>
    %cst_29 = arith.constant dense<0.000000e+00> : vector<16x16xf32>
    %29 = tpu.matmul %4, %22, %cst_29 {dimension_numbers = #tpu.dot_dimension_numbers<[1], [0], [0], [1], [0, 0, 1, 1], [], []>} : vector<16x16xf32>, vector<16x16xf32>, vector<16x16xf32> -> vector<16x16xf32>
    %30 = arith.addf %25, %29 : vector<16x16xf32>
    %cst_30 = arith.constant dense<0.000000e+00> : vector<16x16xf32>
    %31 = tpu.matmul %5, %28, %cst_30 {dimension_numbers = #tpu.dot_dimension_numbers<[1], [0], [0], [1], [0, 0, 1, 1], [], []>} : vector<16x16xf32>, vector<16x16xf32>, vector<16x16xf32> -> vector<16x16xf32>
    %32 = arith.addf %30, %31 : vector<16x16xf32>
    %33 = arith.mulf %32, %3 : vector<16x16xf32>
    %c6 = arith.constant 6 : index
    %c0_31 = arith.constant 0 : index
    %c0_32 = arith.constant 0 : index
    %34 = vector.load %arg5[%c6, %c0_31, %c0_32] : memref<12x16x16xf32, #tpu.memory_space<vmem>>, vector<1x16x16xf32>
    %35 = vector.shape_cast %34 : vector<1x16x16xf32> to vector<16x16xf32>
    %cst_33 = arith.constant dense<0.000000e+00> : vector<16x16xf32>
    %36 = tpu.matmul %33, %35, %cst_33 {dimension_numbers = #tpu.dot_dimension_numbers<[1], [0], [0], [1], [0, 0, 1, 1], [], []>} : vector<16x16xf32>, vector<16x16xf32>, vector<16x16xf32> -> vector<16x16xf32>
    %c7 = arith.constant 7 : index
    %c0_34 = arith.constant 0 : index
    %c0_35 = arith.constant 0 : index
    %37 = vector.load %arg5[%c7, %c0_34, %c0_35] : memref<12x16x16xf32, #tpu.memory_space<vmem>>, vector<1x16x16xf32>
    %38 = vector.shape_cast %37 : vector<1x16x16xf32> to vector<16x16xf32>
    %cst_36 = arith.constant dense<0.000000e+00> : vector<16x16xf32>
    %39 = tpu.matmul %33, %38, %cst_36 {dimension_numbers = #tpu.dot_dimension_numbers<[1], [0], [0], [1], [0, 0, 1, 1], [], []>} : vector<16x16xf32>, vector<16x16xf32>, vector<16x16xf32> -> vector<16x16xf32>
    %c8 = arith.constant 8 : index
    %c0_37 = arith.constant 0 : index
    %c0_38 = arith.constant 0 : index
    %40 = vector.load %arg5[%c8, %c0_37, %c0_38] : memref<12x16x16xf32, #tpu.memory_space<vmem>>, vector<1x16x16xf32>
    %41 = vector.shape_cast %40 : vector<1x16x16xf32> to vector<16x16xf32>
    %cst_39 = arith.constant dense<0.000000e+00> : vector<16x16xf32>
    %42 = tpu.matmul %33, %41, %cst_39 {dimension_numbers = #tpu.dot_dimension_numbers<[1], [0], [0], [1], [0, 0, 1, 1], [], []>} : vector<16x16xf32>, vector<16x16xf32>, vector<16x16xf32> -> vector<16x16xf32>
    %cst_40 = arith.constant dense<0.000000e+00> : vector<16x16xf32>
    %43 = tpu.matmul %4, %36, %cst_40 {dimension_numbers = #tpu.dot_dimension_numbers<[1], [0], [0], [1], [0, 0, 1, 1], [], []>} : vector<16x16xf32>, vector<16x16xf32>, vector<16x16xf32> -> vector<16x16xf32>
    %44 = arith.addf %39, %43 : vector<16x16xf32>
    %cst_41 = arith.constant dense<0.000000e+00> : vector<16x16xf32>
    %45 = tpu.matmul %5, %42, %cst_41 {dimension_numbers = #tpu.dot_dimension_numbers<[1], [0], [0], [1], [0, 0, 1, 1], [], []>} : vector<16x16xf32>, vector<16x16xf32>, vector<16x16xf32> -> vector<16x16xf32>
    %46 = arith.addf %44, %45 : vector<16x16xf32>
    %47 = arith.mulf %46, %3 : vector<16x16xf32>
    %c9 = arith.constant 9 : index
    %c0_42 = arith.constant 0 : index
    %c0_43 = arith.constant 0 : index
    %48 = vector.load %arg5[%c9, %c0_42, %c0_43] : memref<12x16x16xf32, #tpu.memory_space<vmem>>, vector<1x16x16xf32>
    %49 = vector.shape_cast %48 : vector<1x16x16xf32> to vector<16x16xf32>
    %cst_44 = arith.constant dense<0.000000e+00> : vector<16x16xf32>
    %50 = tpu.matmul %47, %49, %cst_44 {dimension_numbers = #tpu.dot_dimension_numbers<[1], [0], [0], [1], [0, 0, 1, 1], [], []>} : vector<16x16xf32>, vector<16x16xf32>, vector<16x16xf32> -> vector<16x16xf32>
    %c10 = arith.constant 10 : index
    %c0_45 = arith.constant 0 : index
    %c0_46 = arith.constant 0 : index
    %51 = vector.load %arg5[%c10, %c0_45, %c0_46] : memref<12x16x16xf32, #tpu.memory_space<vmem>>, vector<1x16x16xf32>
    %52 = vector.shape_cast %51 : vector<1x16x16xf32> to vector<16x16xf32>
    %cst_47 = arith.constant dense<0.000000e+00> : vector<16x16xf32>
    %53 = tpu.matmul %47, %52, %cst_47 {dimension_numbers = #tpu.dot_dimension_numbers<[1], [0], [0], [1], [0, 0, 1, 1], [], []>} : vector<16x16xf32>, vector<16x16xf32>, vector<16x16xf32> -> vector<16x16xf32>
    %c11 = arith.constant 11 : index
    %c0_48 = arith.constant 0 : index
    %c0_49 = arith.constant 0 : index
    %54 = vector.load %arg5[%c11, %c0_48, %c0_49] : memref<12x16x16xf32, #tpu.memory_space<vmem>>, vector<1x16x16xf32>
    %55 = vector.shape_cast %54 : vector<1x16x16xf32> to vector<16x16xf32>
    %cst_50 = arith.constant dense<0.000000e+00> : vector<16x16xf32>
    %56 = tpu.matmul %47, %55, %cst_50 {dimension_numbers = #tpu.dot_dimension_numbers<[1], [0], [0], [1], [0, 0, 1, 1], [], []>} : vector<16x16xf32>, vector<16x16xf32>, vector<16x16xf32> -> vector<16x16xf32>
    %cst_51 = arith.constant dense<0.000000e+00> : vector<16x16xf32>
    %57 = tpu.matmul %4, %50, %cst_51 {dimension_numbers = #tpu.dot_dimension_numbers<[1], [0], [0], [1], [0, 0, 1, 1], [], []>} : vector<16x16xf32>, vector<16x16xf32>, vector<16x16xf32> -> vector<16x16xf32>
    %58 = arith.addf %53, %57 : vector<16x16xf32>
    %cst_52 = arith.constant dense<0.000000e+00> : vector<16x16xf32>
    %59 = tpu.matmul %5, %56, %cst_52 {dimension_numbers = #tpu.dot_dimension_numbers<[1], [0], [0], [1], [0, 0, 1, 1], [], []>} : vector<16x16xf32>, vector<16x16xf32>, vector<16x16xf32> -> vector<16x16xf32>
    %60 = arith.addf %58, %59 : vector<16x16xf32>
    %61 = arith.mulf %60, %3 : vector<16x16xf32>
    %c0_53 = arith.constant 0 : index
    %c0_54 = arith.constant 0 : index
    %c0_55 = arith.constant 0 : index
    %62 = vector.load %arg6[%c0_53, %c0_54, %c0_55] : memref<1x16x16xf32, #tpu.memory_space<vmem>>, vector<1x16x16xf32>
    %63 = vector.shape_cast %62 : vector<1x16x16xf32> to vector<16x16xf32>
    %64 = vector.shape_cast %61 : vector<16x16xf32> to vector<1x16x16xf32>
    tpu.vector_store %arg6[%c0_53, %c0_54, %c0_55], %64 {strides = array<i32>} : memref<1x16x16xf32, #tpu.memory_space<vmem>>, vector<1x16x16xf32>,
    return
  }
  func.func @transform_0(%arg0: i32) -> (i32, i32, i32) {
    %c0_i32 = arith.constant 0 : i32
    %c0_i32_0 = arith.constant 0 : i32
    %c0_i32_1 = arith.constant 0 : i32
    return %arg0, %c0_i32, %c0_i32_0 : i32, i32, i32
  }
  func.func @transform_1(%arg0: i32) -> (i32, i32, i32) {
    %c0_i32 = arith.constant 0 : i32
    %c0_i32_0 = arith.constant 0 : i32
    %c0_i32_1 = arith.constant 0 : i32
    %c0_i32_2 = arith.constant 0 : i32
    return %c0_i32, %c0_i32_0, %c0_i32_1 : i32, i32, i32
  }
  func.func @transform_2(%arg0: i32) -> (i32, i32) {
    %c0_i32 = arith.constant 0 : i32
    %c0_i32_0 = arith.constant 0 : i32
    %c0_i32_1 = arith.constant 0 : i32
    return %c0_i32, %c0_i32_0 : i32, i32
  }
  func.func @transform_3(%arg0: i32) -> (i32, i32) {
    %c0_i32 = arith.constant 0 : i32
    %c0_i32_0 = arith.constant 0 : i32
    %c0_i32_1 = arith.constant 0 : i32
    return %c0_i32, %c0_i32_0 : i32, i32
  }
  func.func @transform_4(%arg0: i32) -> (i32, i32, i32) {
    %c0_i32 = arith.constant 0 : i32
    %c0_i32_0 = arith.constant 0 : i32
    %c0_i32_1 = arith.constant 0 : i32
    %c0_i32_2 = arith.constant 0 : i32
    return %c0_i32, %c0_i32_0, %c0_i32_1 : i32, i32, i32
  }
  func.func @transform_5(%arg0: i32) -> (i32, i32, i32) {
    %c0_i32 = arith.constant 0 : i32
    %c0_i32_0 = arith.constant 0 : i32
    %c0_i32_1 = arith.constant 0 : i32
    return %arg0, %c0_i32, %c0_i32_0 : i32, i32, i32
  }
}

</mosaic_0001>

<llo_original>
// kernel: tpu_custom_call.1
$region0: #{tpu_custom_call.1}
  #allocation0 [shape = 'u32[]', space=smem, size = 0x4, offset = 0x4, fixed_abs, tag = 'smem constant byte address 0x4 - core index']
  #allocation1 [shape = 'u32[144,128]{1,0:T(1,128)}', space=vmem, size = 0x12000, scoped, tag = 'internal scratch']
  %s0 = inlined_call_operand.hbm [shape: f32[2,16,16], index: 0, kind: input, shape index: {}]
  %s1 = inlined_call_operand.hbm [shape: f32[1,16,16], index: 1, kind: input, shape index: {}]
  %s2 = inlined_call_operand.hbm [shape: f32[16,16], index: 2, kind: input, shape index: {}]
  %s3 = inlined_call_operand.hbm [shape: f32[16,16], index: 3, kind: input, shape index: {}]
  %s4 = inlined_call_operand.hbm [shape: f32[12,16,16], index: 4, kind: input, shape index: {}]
  %s5 = inlined_call_operand.hbm [shape: f32[2,16,16], index: 5, kind: output, shape index: {}]
  %s6 = sld [smem:[#allocation0]]
  $region73: #{tpu_custom_call.1} parent=0
    _
  %s8 = ssub.s32 1, %s6
  %s9 = scalar_select 0, %s8, %s6
  $region1: #{tpu_custom_call.1} parent=0
    #allocation2 [shape = 'u8[16384]{0}', space=vmem, size = 0x4000, scoped, tag = 'input window, operand 0']
    #allocation3 [shape = 's32[2]{0}', space=sflag, size = 0x8, scoped, tag = 'scoped memory for tpu_custom_call.1']
    #allocation4 [shape = 's32[2]{0}', space=sflag, size = 0x8, scoped, tag = 'scoped memory for tpu_custom_call.1']
    #allocation5 [shape = 'u8[8192]{0}', space=vmem, size = 0x2000, scoped, tag = 'input window, operand 1, single buffered']
    #allocation6 [shape = 's32[1]{0}', space=sflag, size = 0x4, scoped, tag = 'scoped memory for tpu_custom_call.1']
    #allocation7 [shape = 'u8[8192]{0}', space=vmem, size = 0x2000, scoped, tag = 'input window, operand 2, single buffered']
    #allocation8 [shape = 'u8[8192]{0}', space=vmem, size = 0x2000, scoped, tag = 'input window, operand 3, single buffered']
    #allocation9 [shape = 's32[1]{0}', space=sflag, size = 0x4, scoped, tag = 'scoped memory for tpu_custom_call.1']
    #allocation10 [shape = 'u8[98304]{0}', space=vmem, size = 0x18000, scoped, tag = 'input window, operand 4, single buffered']
    #allocation11 [shape = 'u8[16384]{0}', space=vmem, size = 0x4000, scoped, tag = 'output window, operand 0']
    %10 = vsyncpa [#allocation3], 0
    %s11 = scalar_lea.sflag [#allocation3], 1
    %12 = vsyncpa %s11, 0
    %13 = vsyncpa [#allocation6], 0
    %14 = vsyncpa [#allocation9], 0
    %15 = vsyncpa [#allocation4], 0
    %s16 = scalar_lea.sflag [#allocation4], 1
    %17 = vsyncpa %s16, 0
    loop: start=0, step=1, limit=4
    $region2: #{tpu_custom_call.1} parent=1 // loop_pre_header
      _
    $region3: #{tpu_custom_call.1} parent=1 // loop_header
      %s19 = sphi 0, %s23
      %p20 = scmp.ge.s32.totalorder %s19, 4
      %s29 = sphi 0, %s31
      %s32 = sphi 0, %s29
      %s33 = sphi 0, %s32
      %s49 = sphi 0, %s33
      %s53 = sphi 0, %s53
      %s55 = sphi 0, %s53
      %s56 = sphi 0, %s55
      %s70 = sphi 0, %s56
      %s74 = sphi 0, %s74
      %s76 = sphi 0, %s74
      %s77 = sphi 0, %s76
      %s91 = sphi 0, %s77
      %s95 = sphi 0, %s95
      %s97 = sphi 0, %s95
      %s98 = sphi 0, %s97
      %s112 = sphi 0, %s98
      %s116 = sphi 0, %s116
      %s118 = sphi 0, %s116
      %s119 = sphi 0, %s118
      %s133 = sphi 0, %s119
      %s139 = sphi 0, %s141
      %s142 = sphi 0, %s139
      %s143 = sphi 0, %s142
      %s159 = sphi 0, %s143
    $region4: #{tpu_custom_call.1} parent=1 // loop_header_branch
      %22 = sbr.rel (%p20) target = $region8
    $region5: #{tpu_custom_call.1} parent=1 // loop_body
      %s24 = ssub.s32 %s19, 1
      %s25 = ssub.s32 %s19, 2
      %s26 = sadd.s32 %s19, 1
      %s27 = ssub.s32 %s19, %s26
      %p28 = scmp.eq.s32.totalorder %s27, 0
      %s30 = sadd.s32 %s29, 1
      %s31 = scalar_select %p28, %s29, %s30
      %p34 = pneg %p28
      %p35 = scmp.eq.s32.totalorder %s19, 1
      %p36 = por %p34, %p35
      %p37 = scmp.ne.s32.totalorder %s29, %s32
      %p38 = scmp.eq.s32.totalorder %s19, 0
      %p39 = por %p37, %p38
      %p40 = scmp.ne.s32.totalorder %s29, %s32
      %p41 = scmp.eq.s32.totalorder %s24, 1
      %p42 = por %p40, %p41
      %p43 = scmp.ne.s32.totalorder %s32, %s33
      %p44 = scmp.eq.s32.totalorder %s24, 0
      %p45 = por %p43, %p44
      %p46 = scmp.ne.s32.totalorder %s32, %s33
      %p47 = scmp.eq.s32.totalorder %s25, 1
      %p48 = por %p46, %p47
      %p50 = scmp.ne.s32.totalorder %s33, %s49
      %p51 = scmp.eq.s32.totalorder %s25, 0
      %p52 = por %p50, %p51
      %s54 = sadd.s32 %s53, 1
      %p57 = scmp.eq.s32.totalorder %s19, 1
      %p58 = scmp.ne.s32.totalorder %s53, %s55
      %p59 = scmp.eq.s32.totalorder %s19, 0
      %p60 = por %p58, %p59
      %p61 = scmp.ne.s32.totalorder %s53, %s55
      %p62 = scmp.eq.s32.totalorder %s24, 1
      %p63 = por %p61, %p62
      %p64 = scmp.ne.s32.totalorder %s55, %s56
      %p65 = scmp.eq.s32.totalorder %s24, 0
      %p66 = por %p64, %p65
      %p67 = scmp.ne.s32.totalorder %s55, %s56
      %p68 = scmp.eq.s32.totalorder %s25, 1
      %p69 = por %p67, %p68
      %p71 = scmp.ne.s32.totalorder %s56, %s70
      %p72 = scmp.eq.s32.totalorder %s25, 0
      %p73 = por %p71, %p72
      %s75 = sadd.s32 %s74, 1
      %p78 = scmp.eq.s32.totalorder %s19, 1
      %p79 = scmp.ne.s32.totalorder %s74, %s76
      %p80 = scmp.eq.s32.totalorder %s19, 0
      %p81 = por %p79, %p80
      %p82 = scmp.ne.s32.totalorder %s74, %s76
      %p83 = scmp.eq.s32.totalorder %s24, 1
      %p84 = por %p82, %p83
      %p85 = scmp.ne.s32.totalorder %s76, %s77
      %p86 = scmp.eq.s32.totalorder %s24, 0
      %p87 = por %p85, %p86
      %p88 = scmp.ne.s32.totalorder %s76, %s77
      %p89 = scmp.eq.s32.totalorder %s25, 1
      %p90 = por %p88, %p89
      %p92 = scmp.ne.s32.totalorder %s77, %s91
      %p93 = scmp.eq.s32.totalorder %s25, 0
      %p94 = por %p92, %p93
      %s96 = sadd.s32 %s95, 1
      %p99 = scmp.eq.s32.totalorder %s19, 1
      %p100 = scmp.ne.s32.totalorder %s95, %s97
      %p101 = scmp.eq.s32.totalorder %s19, 0
      %p102 = por %p100, %p101
      %p103 = scmp.ne.s32.totalorder %s95, %s97
      %p104 = scmp.eq.s32.totalorder %s24, 1
      %p105 = por %p103, %p104
      %p106 = scmp.ne.s32.totalorder %s97, %s98
      %p107 = scmp.eq.s32.totalorder %s24, 0
      %p108 = por %p106, %p107
      %p109 = scmp.ne.s32.totalorder %s97, %s98
      %p110 = scmp.eq.s32.totalorder %s25, 1
      %p111 = por %p109, %p110
      %p113 = scmp.ne.s32.totalorder %s98, %s112
      %p114 = scmp.eq.s32.totalorder %s25, 0
      %p115 = por %p113, %p114
      %s117 = sadd.s32 %s116, 1
      %p120 = scmp.eq.s32.totalorder %s19, 1
      %p121 = scmp.ne.s32.totalorder %s116, %s118
      %p122 = scmp.eq.s32.totalorder %s19, 0
      %p123 = por %p121, %p122
      %p124 = scmp.ne.s32.totalorder %s116, %s118
      %p125 = scmp.eq.s32.totalorder %s24, 1
      %p126 = por %p124, %p125
      %p127 = scmp.ne.s32.totalorder %s118, %s119
      %p128 = scmp.eq.s32.totalorder %s24, 0
      %p129 = por %p127, %p128
      %p130 = scmp.ne.s32.totalorder %s118, %s119
      %p131 = scmp.eq.s32.totalorder %s25, 1
      %p132 = por %p130, %p131
      %p134 = scmp.ne.s32.totalorder %s119, %s133
      %p135 = scmp.eq.s32.totalorder %s25, 0
      %p136 = por %p134, %p135
      %s137 = ssub.s32 %s19, %s26
      %p138 = scmp.eq.s32.totalorder %s137, 0
      %s140 = sadd.s32 %s139, 1
      %s141 = scalar_select %p138, %s139, %s140
      %p144 = pneg %p138
      %p145 = scmp.eq.s32.totalorder %s19, 1
      %p146 = por %p144, %p145
      %p147 = scmp.ne.s32.totalorder %s139, %s142
      %p148 = scmp.eq.s32.totalorder %s19, 0
      %p149 = por %p147, %p148
      %p150 = scmp.ne.s32.totalorder %s139, %s142
      %p151 = scmp.eq.s32.totalorder %s24, 1
      %p152 = por %p150, %p151
      %p153 = scmp.ne.s32.totalorder %s142, %s143
      %p154 = scmp.eq.s32.totalorder %s24, 0
      %p155 = por %p153, %p154
      %p156 = scmp.ne.s32.totalorder %s142, %s143
      %p157 = scmp.eq.s32.totalorder %s25, 1
      %p158 = por %p156, %p157
      %p160 = scmp.ne.s32.totalorder %s143, %s159
      %p161 = scmp.eq.s32.totalorder %s25, 0
      %p162 = por %p160, %p161
      %p163 = scmp.le.s32.totalorder 1, %s19
      %p164 = scmp.lt.s32.totalorder %s19, 3
      %p165 = pnand %p163, %p164
      %p166 = pneg %p165
      // Predicated region
      $region9: #{tpu_custom_call.1} parent=5 // pred_check
        _
      $region10: #{tpu_custom_call.1} parent=5 // pred_check_branch
        %168 = sbr.rel (%p165) target = $region12
      $region11: #{tpu_custom_call.1} parent=5 // pred_region
        %s169 = ssub.s32 %s19, 1
        // Predicated region
        $region13: #{tpu_custom_call.1} parent=11 // pred_check
          %p170 = pneg %p66
        $region14: #{tpu_custom_call.1} parent=11 // pred_check_branch
          %172 = sbr.rel (%p170) target = $region16
        $region15: #{tpu_custom_call.1} parent=11 // pred_region
          %s174 = ssub.s32 256, 256
          %175 = vsyncadd [#allocation6], %s174
          %s176 = sshll.u32 [#allocation5], 4
          %s177 = int_to_ptr.vmem [resolvable:$true] %s176
          %182 = dma.hbm_to_vmem [thread:$0]  %s1, 256, %s177, [#allocation6], 128, 128, 8
        $region16: #{tpu_custom_call.1} parent=11 // pred_fallthru
          _
        // Predicated region
        $region17: #{tpu_custom_call.1} parent=11 // pred_check
          %p183 = pneg %p87
        $region18: #{tpu_custom_call.1} parent=11 // pred_check_branch
          %185 = sbr.rel (%p183) target = $region20
        $region19: #{tpu_custom_call.1} parent=11 // pred_region
          %s187 = ssub.s32 256, 256
          %188 = vsyncadd [#allocation6], %s187
          %s189 = sshll.u32 [#allocation7], 4
          %s190 = int_to_ptr.vmem [resolvable:$true] %s189
          %195 = dma.hbm_to_vmem [thread:$0]  %s2, 256, %s190, [#allocation6], 128, 128, 8
        $region20: #{tpu_custom_call.1} parent=11 // pred_fallthru
          _
        // Predicated region
        $region21: #{tpu_custom_call.1} parent=11 // pred_check
          %p196 = pneg %p108
        $region22: #{tpu_custom_call.1} parent=11 // pred_check_branch
          %198 = sbr.rel (%p196) target = $region24
        $region23: #{tpu_custom_call.1} parent=11 // pred_region
          %s200 = ssub.s32 256, 256
          %201 = vsyncadd [#allocation9], %s200
          %s202 = sshll.u32 [#allocation8], 4
          %s203 = int_to_ptr.vmem [resolvable:$true] %s202
          %208 = dma.hbm_to_vmem [thread:$0]  %s3, 256, %s203, [#allocation9], 128, 128, 8
        $region24: #{tpu_custom_call.1} parent=11 // pred_fallthru
          _
        // Predicated region
        $region25: #{tpu_custom_call.1} parent=11 // pred_check
          %p209 = pneg %p129
        $region26: #{tpu_custom_call.1} parent=11 // pred_check_branch
          %211 = sbr.rel (%p209) target = $region28
        $region27: #{tpu_custom_call.1} parent=11 // pred_region
          %s213 = ssub.s32 3072, 3072
          %214 = vsyncadd [#allocation9], %s213
          %s215 = sshll.u32 [#allocation10], 4
          %s216 = int_to_ptr.vmem [resolvable:$true] %s215
          %221 = dma.hbm_to_vmem [thread:$0]  %s4, 3072, %s216, [#allocation9], 128, 128, 8
        $region28: #{tpu_custom_call.1} parent=11 // pred_fallthru
          _
      $region12: #{tpu_custom_call.1} parent=5 // pred_fallthru
        _
      %p222 = scmp.lt.s32.totalorder %s19, 2
      // Predicated region
      $region29: #{tpu_custom_call.1} parent=5 // pred_check
        %p223 = pneg %p222
      $region30: #{tpu_custom_call.1} parent=5 // pred_check_branch
        %225 = sbr.rel (%p223) target = $region32
      $region31: #{tpu_custom_call.1} parent=5 // pred_region
        // Predicated region
        $region33: #{tpu_custom_call.1} parent=31 // pred_check
          %p226 = pneg %p39
        $region34: #{tpu_custom_call.1} parent=31 // pred_check_branch
          %228 = sbr.rel (%p226) target = $region36
        $region35: #{tpu_custom_call.1} parent=31 // pred_region
          %s229 = sand.u32 %s29, 1
          %s230 = scalar_lea.sflag [#allocation3], %s229
          %s231 = sand.u32 %s29, 1
          %s232 = smul.addr %s231, 16
          %s233 = scalar_lea.vmem [#allocation2], %s232
          %s235 = ssub.s32 256, 256
          %236 = vsyncadd %s230, %s235
          %s237 = smul.addr %s19, 2
          %s238 = smul.addr %s237, 128
          %s239 = scalar_lea.hbm %s0, %s238
          %s240 = sshll.u32 %s233, 4
          %s241 = int_to_ptr.vmem [resolvable:$true] %s240
          %246 = dma.hbm_to_vmem [thread:$0]  %s239, 256, %s241, %s230, 128, 128, 8
        $region36: #{tpu_custom_call.1} parent=31 // pred_fallthru
          _
      $region32: #{tpu_custom_call.1} parent=5 // pred_fallthru
        _
      %p247 = scmp.le.s32.totalorder 1, %s19
      %p248 = scmp.lt.s32.totalorder %s19, 3
      %p249 = pnand %p247, %p248
      %p250 = pneg %p249
      // Predicated region
      $region37: #{tpu_custom_call.1} parent=5 // pred_check
        _
      $region38: #{tpu_custom_call.1} parent=5 // pred_check_branch
        %252 = sbr.rel (%p249) target = $region40
      $region39: #{tpu_custom_call.1} parent=5 // pred_region
        %s253 = ssub.s32 %s19, 1
        %s254 = sand.u32 %s32, 1
        %s255 = scalar_lea.sflag [#allocation3], %s254
        %s256 = sand.u32 %s32, 1
        %s257 = smul.addr %s256, 16
        %s258 = scalar_lea.vmem [#allocation2], %s257
        // Predicated region
        $region41: #{tpu_custom_call.1} parent=39 // pred_check
          %p259 = pneg %p45
        $region42: #{tpu_custom_call.1} parent=39 // pred_check_branch
          %261 = sbr.rel (%p259) target = $region44
        $region43: #{tpu_custom_call.1} parent=39 // pred_region
          %262 = dma.done %s255, 256
        $region44: #{tpu_custom_call.1} parent=39 // pred_fallthru
          _
        // Predicated region
        $region45: #{tpu_custom_call.1} parent=39 // pred_check
          %p263 = pneg %p66
        $region46: #{tpu_custom_call.1} parent=39 // pred_check_branch
          %265 = sbr.rel (%p263) target = $region48
        $region47: #{tpu_custom_call.1} parent=39 // pred_region
          %266 = dma.done [#allocation6], 256
        $region48: #{tpu_custom_call.1} parent=39 // pred_fallthru
          _
        // Predicated region
        $region49: #{tpu_custom_call.1} parent=39 // pred_check
          %p267 = pneg %p87
        $region50: #{tpu_custom_call.1} parent=39 // pred_check_branch
          %269 = sbr.rel (%p267) target = $region52
        $region51: #{tpu_custom_call.1} parent=39 // pred_region
          %270 = dma.done [#allocation6], 256
        $region52: #{tpu_custom_call.1} parent=39 // pred_fallthru
          _
        // Predicated region
        $region53: #{tpu_custom_call.1} parent=39 // pred_check
          %p271 = pneg %p108
        $region54: #{tpu_custom_call.1} parent=39 // pred_check_branch
          %273 = sbr.rel (%p271) target = $region56
        $region55: #{tpu_custom_call.1} parent=39 // pred_region
          %274 = dma.done [#allocation9], 256
        $region56: #{tpu_custom_call.1} parent=39 // pred_fallthru
          _
        // Predicated region
        $region57: #{tpu_custom_call.1} parent=39 // pred_check
          %p275 = pneg %p129
        $region58: #{tpu_custom_call.1} parent=39 // pred_check_branch
          %277 = sbr.rel (%p275) target = $region60
        $region59: #{tpu_custom_call.1} parent=39 // pred_region
          %278 = dma.done [#allocation9], 3072
        $region60: #{tpu_custom_call.1} parent=39 // pred_fallthru
          _
        %s279 = sand.u32 %s32, 1
        %s280 = scalar_lea.sflag [#allocation3], %s279
        %s281 = sand.u32 %s32, 1
        %s282 = smul.addr %s281, 16
        %s283 = scalar_lea.vmem [#allocation2], %s282
        %p284 = pneg %p45
        %p285 = pneg %p42
        %p286 = pneg %p66
        %p287 = pneg %p63
        %p288 = pneg %p87
        %p289 = pneg %p84
        %p290 = pneg %p108
        %p291 = pneg %p105
        %p292 = pneg %p129
        %p293 = pneg %p126
        %p294 = pneg %p155
        %p295 = pneg %p152
        %s296 = sand.u32 %s142, 1
        %s297 = scalar_lea.sflag [#allocation4], %s296
        %s298 = sand.u32 %s142, 1
        %s299 = smul.addr %s298, 16
        %s300 = scalar_lea.vmem [#allocation11], %s299
        %v301 = vld [vmem:[%s258] sm:$0xff]
        %v302 = vld [vmem:[%s258 + $0x8] sm:$0xff]
        %v303 = vld [vmem:[#allocation5] sm:$0xff]
        %v304 = vld [vmem:[#allocation5 + $0x8] sm:$0xff]
        %v305 = vld [vmem:[#allocation7] sm:$0xff]
        %v306 = vld [vmem:[#allocation7 + $0x8] sm:$0xff]
        %v307 = vld [vmem:[#allocation8] sm:$0xff]
        %v308 = vld [vmem:[#allocation8 + $0x8] sm:$0xff]
        %v309 = vld [vmem:[#allocation10] sm:$0xff]
        %v310 = vld [vmem:[#allocation10 + $0x8] sm:$0xff]
        %vm311 = vcmask 130048
        %v313 = vsel %vm311, %v301, 0
        %v316 = vsel %vm311, %v302, 0
        %318 = vmatprep.subr.mxu0 0.0
        %319 = vmatpush1.msra.mxu0 %v309
        %320 = vmatprep.subr.mxu0 0.0
        %321 = vmatpush1.msra.mxu0 %v310
        %322 = vmatprep.subr.mxu0 0.0
        %323 = vmatpush1.msra.mxu0 0.0
        %324 = vmatprep.subr.mxu0 0.0
        %325 = vmatpush1.msra.mxu0 0.0
        %326 = vmatprep.subr.mxu0 0.0
        %327 = vmatpush1.msra.mxu0 0.0
        %328 = vmatprep.subr.mxu0 0.0
        %329 = vmatpush1.msra.mxu0 0.0
        %330 = vmatprep.subr.mxu0 0.0
        %331 = vmatpush1.msra.mxu0 0.0
        %332 = vmatprep.subr.mxu0 0.0
        %333 = vmatpush1.msra.mxu0 0.0
        %334 = vmatprep.subr.mxu0 0.0
        %335 = vmatpush1.msra.mxu0 0.0
        %336 = vmatprep.subr.mxu0 0.0
        %337 = vmatpush1.msra.mxu0 0.0
        %338 = vmatprep.subr.mxu0 0.0
        %339 = vmatpush1.msra.mxu0 0.0
        %340 = vmatprep.subr.mxu0 0.0
        %341 = vmatpush1.msra.mxu0 0.0
        %342 = vmatprep.subr.mxu0 0.0
        %343 = vmatpush1.msra.mxu0 0.0
        %344 = vmatprep.subr.mxu0 0.0
        %345 = vmatpush1.msra.mxu0 0.0
        %346 = vmatprep.subr.mxu0 0.0
        %347 = vmatpush1.msra.mxu0 0.0
        %348 = vmatprep.subr.mxu0 0.0
        %349 = vmatpush1.msra.mxu0 0.0
        %350 = vmatprep.subr.mxu0 0.0
        %351 = vmatpush1.msra.mxu0 0.0
        %352 = vmatprep.subr.mxu0 0.0
        %353 = vmatpush1.msra.mxu0 0.0
        %354 = vmatprep.subr.mxu0 0.0
        %355 = vmatpush1.msra.mxu0 0.0
        %356 = vmatprep.subr.mxu0 0.0
        %357 = vmatpush1.msra.mxu0 0.0
        %358 = vmatprep.subr.mxu0 0.0
        %359 = vmatpush1.msra.mxu0 0.0
        %360 = vmatprep.subr.mxu0 0.0
        %361 = vmatpush1.msra.mxu0 0.0
        %362 = vmatprep.subr.mxu0 0.0
        %363 = vmatpush1.msra.mxu0 0.0
        %364 = vmatprep.subr.mxu0 0.0
        %365 = vmatpush1.msra.mxu0 0.0
        %366 = vmatprep.subr.mxu0 0.0
        %367 = vmatpush1.msra.mxu0 0.0
        %368 = vmatprep.subr.mxu0 0.0
        %369 = vmatpush1.msra.mxu0 0.0
        %370 = vmatprep.subr.mxu0 0.0
        %371 = vmatpush1.msra.mxu0 0.0
        %372 = vmatprep.subr.mxu0 0.0
        %373 = vmatpush1.msra.mxu0 0.0
        %374 = vmatprep.subr.mxu0 0.0
        %375 = vmatpush1.msra.mxu0 0.0
        %376 = vmatprep.subr.mxu0 0.0
        %377 = vmatpush1.msra.mxu0 0.0
        %378 = vmatprep.subr.mxu0 0.0
        %379 = vmatpush1.msra.mxu0 0.0
        %380 = vmatprep.subr.mxu0 0.0
        %381 = vmatpush1.msra.mxu0 0.0
        %382 = vmatprep.mubr.f32.mxu0 0.0
        %383 = vmatmul.mubr.f32.gmra.mrb[0].mxu0 %v313
        %v384 = vpop.f32.mrb[0].mxu0
        %v385 = vadd.f32 0.0, %v384
        %v386 = vpop.f32.mrb[0].mxu0
        %387 = vmatprep.mubr.f32.mxu0 0.0
        %388 = vmatmul.mubr.f32.gmra.mrb[0].mxu0 %v316
        %v389 = vpop.f32.mrb[0].mxu0
        %v390 = vadd.f32 0.0, %v389
        %v391 = vpop.f32.mrb[0].mxu0
        %392 = vdwg.mxu0
        %s393 = scalar_lea.vmem [#allocation10], 16
        %v394 = vld [vmem:[%s393] sm:$0xff]
        %v395 = vld [vmem:[%s393 + $0x8] sm:$0xff]
        %s396 = scalar_lea.vmem [#allocation10], 32
        %v397 = vld [vmem:[%s396] sm:$0xff]
        %v398 = vld [vmem:[%s396 + $0x8] sm:$0xff]
        %399 = vmatprep.subr.mxu0 0.0
        %400 = vmatpush1.msra.mxu0 %v397
        %401 = vmatprep.subr.mxu0 0.0
        %402 = vmatpush1.msra.mxu0 %v398
        %403 = vmatprep.subr.mxu0 0.0
        %404 = vmatpush1.msra.mxu0 0.0
        %405 = vmatprep.subr.mxu0 0.0
        %406 = vmatpush1.msra.mxu0 0.0
        %407 = vmatprep.subr.mxu0 0.0
        %408 = vmatpush1.msra.mxu0 0.0
        %409 = vmatprep.subr.mxu0 0.0
        %410 = vmatpush1.msra.mxu0 0.0
        %411 = vmatprep.subr.mxu0 0.0
        %412 = vmatpush1.msra.mxu0 0.0
        %413 = vmatprep.subr.mxu0 0.0
        %414 = vmatpush1.msra.mxu0 0.0
        %415 = vmatprep.subr.mxu0 0.0
        %416 = vmatpush1.msra.mxu0 0.0
        %417 = vmatprep.subr.mxu0 0.0
        %418 = vmatpush1.msra.mxu0 0.0
        %419 = vmatprep.subr.mxu0 0.0
        %420 = vmatpush1.msra.mxu0 0.0
        %421 = vmatprep.subr.mxu0 0.0
        %422 = vmatpush1.msra.mxu0 0.0
        %423 = vmatprep.subr.mxu0 0.0
        %424 = vmatpush1.msra.mxu0 0.0
        %425 = vmatprep.subr.mxu0 0.0
        %426 = vmatpush1.msra.mxu0 0.0
        %427 = vmatprep.subr.mxu0 0.0
        %428 = vmatpush1.msra.mxu0 0.0
        %429 = vmatprep.subr.mxu0 0.0
        %430 = vmatpush1.msra.mxu0 0.0
        %431 = vmatprep.subr.mxu0 0.0
        %432 = vmatpush1.msra.mxu0 0.0
        %433 = vmatprep.subr.mxu0 0.0
        %434 = vmatpush1.msra.mxu0 0.0
        %435 = vmatprep.subr.mxu0 0.0
        %436 = vmatpush1.msra.mxu0 0.0
        %437 = vmatprep.subr.mxu0 0.0
        %438 = vmatpush1.msra.mxu0 0.0
        %439 = vmatprep.subr.mxu0 0.0
        %440 = vmatpush1.msra.mxu0 0.0
        %441 = vmatprep.subr.mxu0 0.0
        %442 = vmatpush1.msra.mxu0 0.0
        %443 = vmatprep.subr.mxu0 0.0
        %444 = vmatpush1.msra.mxu0 0.0
        %445 = vmatprep.subr.mxu0 0.0
        %446 = vmatpush1.msra.mxu0 0.0
        %447 = vmatprep.subr.mxu0 0.0
        %448 = vmatpush1.msra.mxu0 0.0
        %449 = vmatprep.subr.mxu0 0.0
        %450 = vmatpush1.msra.mxu0 0.0
        %451 = vmatprep.subr.mxu0 0.0
        %452 = vmatpush1.msra.mxu0 0.0
        %453 = vmatprep.subr.mxu0 0.0
        %454 = vmatpush1.msra.mxu0 0.0
        %455 = vmatprep.subr.mxu0 0.0
        %456 = vmatpush1.msra.mxu0 0.0
        %457 = vmatprep.subr.mxu0 0.0
        %458 = vmatpush1.msra.mxu0 0.0
        %459 = vmatprep.subr.mxu0 0.0
        %460 = vmatpush1.msra.mxu0 0.0
        %461 = vmatprep.subr.mxu0 0.0
        %462 = vmatpush1.msra.mxu0 0.0
        %463 = vmatprep.mubr.f32.mxu0 0.0
        %464 = vmatmul.mubr.f32.gmra.mrb[0].mxu0 %v313
        %v465 = vpop.f32.mrb[0].mxu0
        %v466 = vadd.f32 0.0, %v465
        %v467 = vpop.f32.mrb[0].mxu0
        %468 = vmatprep.mubr.f32.mxu0 0.0
        %469 = vmatmul.mubr.f32.gmra.mrb[0].mxu0 %v316
        %v470 = vpop.f32.mrb[0].mxu0
        %v471 = vadd.f32 0.0, %v470
        %v472 = vpop.f32.mrb[0].mxu0
        %473 = vdwg.mxu0
        %v475 = vsel %vm311, %v305, 0
        %v478 = vsel %vm311, %v306, 0
        %480 = vmatprep.subr.mxu0 0.0
        %481 = vmatpush1.msra.mxu0 %v385
        %482 = vmatprep.subr.mxu0 0.0
        %483 = vmatpush1.msra.mxu0 %v390
        %484 = vmatprep.subr.mxu0 0.0
        %485 = vmatpush1.msra.mxu0 0.0
        %486 = vmatprep.subr.mxu0 0.0
        %487 = vmatpush1.msra.mxu0 0.0
        %488 = vmatprep.subr.mxu0 0.0
        %489 = vmatpush1.msra.mxu0 0.0
        %490 = vmatprep.subr.mxu0 0.0
        %491 = vmatpush1.msra.mxu0 0.0
        %492 = vmatprep.subr.mxu0 0.0
        %493 = vmatpush1.msra.mxu0 0.0
        %494 = vmatprep.subr.mxu0 0.0
        %495 = vmatpush1.msra.mxu0 0.0
        %496 = vmatprep.subr.mxu0 0.0
        %497 = vmatpush1.msra.mxu0 0.0
        %498 = vmatprep.subr.mxu0 0.0
        %499 = vmatpush1.msra.mxu0 0.0
        %500 = vmatprep.subr.mxu0 0.0
        %501 = vmatpush1.msra.mxu0 0.0
        %502 = vmatprep.subr.mxu0 0.0
        %503 = vmatpush1.msra.mxu0 0.0
        %504 = vmatprep.subr.mxu0 0.0
        %505 = vmatpush1.msra.mxu0 0.0
        %506 = vmatprep.subr.mxu0 0.0
        %507 = vmatpush1.msra.mxu0 0.0
        %508 = vmatprep.subr.mxu0 0.0
        %509 = vmatpush1.msra.mxu0 0.0
        %510 = vmatprep.subr.mxu0 0.0
        %511 = vmatpush1.msra.mxu0 0.0
        %512 = vmatprep.subr.mxu0 0.0
        %513 = vmatpush1.msra.mxu0 0.0
        %514 = vmatprep.subr.mxu0 0.0
        %515 = vmatpush1.msra.mxu0 0.0
        %516 = vmatprep.subr.mxu0 0.0
        %517 = vmatpush1.msra.mxu0 0.0
        %518 = vmatprep.subr.mxu0 0.0
        %519 = vmatpush1.msra.mxu0 0.0
        %520 = vmatprep.subr.mxu0 0.0
        %521 = vmatpush1.msra.mxu0 0.0
        %522 = vmatprep.subr.mxu0 0.0
        %523 = vmatpush1.msra.mxu0 0.0
        %524 = vmatprep.subr.mxu0 0.0
        %525 = vmatpush1.msra.mxu0 0.0
        %526 = vmatprep.subr.mxu0 0.0
        %527 = vmatpush1.msra.mxu0 0.0
        %528 = vmatprep.subr.mxu0 0.0
        %529 = vmatpush1.msra.mxu0 0.0
        %530 = vmatprep.subr.mxu0 0.0
        %531 = vmatpush1.msra.mxu0 0.0
        %532 = vmatprep.subr.mxu0 0.0
        %533 = vmatpush1.msra.mxu0 0.0
        %534 = vmatprep.subr.mxu0 0.0
        %535 = vmatpush1.msra.mxu0 0.0
        %536 = vmatprep.subr.mxu0 0.0
        %537 = vmatpush1.msra.mxu0 0.0
        %538 = vmatprep.subr.mxu0 0.0
        %539 = vmatpush1.msra.mxu0 0.0
        %540 = vmatprep.subr.mxu0 0.0
        %541 = vmatpush1.msra.mxu0 0.0
        %542 = vmatprep.subr.mxu0 0.0
        %543 = vmatpush1.msra.mxu0 0.0
        %544 = vmatprep.mubr.f32.mxu0 0.0
        %545 = vmatmul.mubr.f32.gmra.mrb[0].mxu0 %v475
        %v546 = vpop.f32.mrb[0].mxu0
        %v547 = vadd.f32 0.0, %v546
        %v548 = vpop.f32.mrb[0].mxu0
        %549 = vmatprep.mubr.f32.mxu0 0.0
        %550 = vmatmul.mubr.f32.gmra.mrb[0].mxu0 %v478
        %v551 = vpop.f32.mrb[0].mxu0
        %v552 = vadd.f32 0.0, %v551
        %v553 = vpop.f32.mrb[0].mxu0
        %554 = vdwg.mxu0
        %555 = vmatprep.subr.mxu0 0.0
        %556 = vmatpush1.msra.mxu0 %v394
        %557 = vmatprep.subr.mxu0 0.0
        %558 = vmatpush1.msra.mxu0 %v395
        %559 = vmatprep.subr.mxu0 0.0
        %560 = vmatpush1.msra.mxu0 0.0
        %561 = vmatprep.subr.mxu0 0.0
        %562 = vmatpush1.msra.mxu0 0.0
        %563 = vmatprep.subr.mxu0 0.0
        %564 = vmatpush1.msra.mxu0 0.0
        %565 = vmatprep.subr.mxu0 0.0
        %566 = vmatpush1.msra.mxu0 0.0
        %567 = vmatprep.subr.mxu0 0.0
        %568 = vmatpush1.msra.mxu0 0.0
        %569 = vmatprep.subr.mxu0 0.0
        %570 = vmatpush1.msra.mxu0 0.0
        %571 = vmatprep.subr.mxu0 0.0
        %572 = vmatpush1.msra.mxu0 0.0
        %573 = vmatprep.subr.mxu0 0.0
        %574 = vmatpush1.msra.mxu0 0.0
        %575 = vmatprep.subr.mxu0 0.0
        %576 = vmatpush1.msra.mxu0 0.0
        %577 = vmatprep.subr.mxu0 0.0
        %578 = vmatpush1.msra.mxu0 0.0
        %579 = vmatprep.subr.mxu0 0.0
        %580 = vmatpush1.msra.mxu0 0.0
        %581 = vmatprep.subr.mxu0 0.0
        %582 = vmatpush1.msra.mxu0 0.0
        %583 = vmatprep.subr.mxu0 0.0
        %584 = vmatpush1.msra.mxu0 0.0
        %585 = vmatprep.subr.mxu0 0.0
        %586 = vmatpush1.msra.mxu0 0.0
        %587 = vmatprep.subr.mxu0 0.0
        %588 = vmatpush1.msra.mxu0 0.0
        %589 = vmatprep.subr.mxu0 0.0
        %590 = vmatpush1.msra.mxu0 0.0
        %591 = vmatprep.subr.mxu0 0.0
        %592 = vmatpush1.msra.mxu0 0.0
        %593 = vmatprep.subr.mxu0 0.0
        %594 = vmatpush1.msra.mxu0 0.0
        %595 = vmatprep.subr.mxu0 0.0
        %596 = vmatpush1.msra.mxu0 0.0
        %597 = vmatprep.subr.mxu0 0.0
        %598 = vmatpush1.msra.mxu0 0.0
        %599 = vmatprep.subr.mxu0 0.0
        %600 = vmatpush1.msra.mxu0 0.0
        %601 = vmatprep.subr.mxu0 0.0
        %602 = vmatpush1.msra.mxu0 0.0
        %603 = vmatprep.subr.mxu0 0.0
        %604 = vmatpush1.msra.mxu0 0.0
        %605 = vmatprep.subr.mxu0 0.0
        %606 = vmatpush1.msra.mxu0 0.0
        %607 = vmatprep.subr.mxu0 0.0
        %608 = vmatpush1.msra.mxu0 0.0
        %609 = vmatprep.subr.mxu0 0.0
        %610 = vmatpush1.msra.mxu0 0.0
        %611 = vmatprep.subr.mxu0 0.0
        %612 = vmatpush1.msra.mxu0 0.0
        %613 = vmatprep.subr.mxu0 0.0
        %614 = vmatpush1.msra.mxu0 0.0
        %615 = vmatprep.subr.mxu0 0.0
        %616 = vmatpush1.msra.mxu0 0.0
        %617 = vmatprep.subr.mxu0 0.0
        %618 = vmatpush1.msra.mxu0 0.0
        %619 = vmatprep.mubr.f32.mxu0 0.0
        %620 = vmatmul.mubr.f32.gmra.mrb[0].mxu0 %v313
        %v621 = vpop.f32.mrb[0].mxu0
        %v622 = vadd.f32 %v547, %v621
        %v623 = vpop.f32.mrb[0].mxu0
        %624 = vmatprep.mubr.f32.mxu0 0.0
        %625 = vmatmul.mubr.f32.gmra.mrb[0].mxu0 %v316
        %v626 = vpop.f32.mrb[0].mxu0
        %v627 = vadd.f32 %v552, %v626
        %v628 = vpop.f32.mrb[0].mxu0
        %629 = vdwg.mxu0
        %v631 = vsel %vm311, %v307, 0
        %v634 = vsel %vm311, %v308, 0
        %636 = vmatprep.subr.mxu0 0.0
        %637 = vmatpush1.msra.mxu0 %v466
        %638 = vmatprep.subr.mxu0 0.0
        %639 = vmatpush1.msra.mxu0 %v471
        %640 = vmatprep.subr.mxu0 0.0
        %641 = vmatpush1.msra.mxu0 0.0
        %642 = vmatprep.subr.mxu0 0.0
        %643 = vmatpush1.msra.mxu0 0.0
        %644 = vmatprep.subr.mxu0 0.0
        %645 = vmatpush1.msra.mxu0 0.0
        %646 = vmatprep.subr.mxu0 0.0
        %647 = vmatpush1.msra.mxu0 0.0
        %648 = vmatprep.subr.mxu0 0.0
        %649 = vmatpush1.msra.mxu0 0.0
        %650 = vmatprep.subr.mxu0 0.0
        %651 = vmatpush1.msra.mxu0 0.0
        %652 = vmatprep.subr.mxu0 0.0
        %653 = vmatpush1.msra.mxu0 0.0
        %654 = vmatprep.subr.mxu0 0.0
        %655 = vmatpush1.msra.mxu0 0.0
        %656 = vmatprep.subr.mxu0 0.0
        %657 = vmatpush1.msra.mxu0 0.0
        %658 = vmatprep.subr.mxu0 0.0
        %659 = vmatpush1.msra.mxu0 0.0
        %660 = vmatprep.subr.mxu0 0.0
        %661 = vmatpush1.msra.mxu0 0.0
        %662 = vmatprep.subr.mxu0 0.0
        %663 = vmatpush1.msra.mxu0 0.0
        %664 = vmatprep.subr.mxu0 0.0
        %665 = vmatpush1.msra.mxu0 0.0
        %666 = vmatprep.subr.mxu0 0.0
        %667 = vmatpush1.msra.mxu0 0.0
        %668 = vmatprep.subr.mxu0 0.0
        %669 = vmatpush1.msra.mxu0 0.0
        %670 = vmatprep.subr.mxu0 0.0
        %671 = vmatpush1.msra.mxu0 0.0
        %672 = vmatprep.subr.mxu0 0.0
        %673 = vmatpush1.msra.mxu0 0.0
        %674 = vmatprep.subr.mxu0 0.0
        %675 = vmatpush1.msra.mxu0 0.0
        %676 = vmatprep.subr.mxu0 0.0
        %677 = vmatpush1.msra.mxu0 0.0
        %678 = vmatprep.subr.mxu0 0.0
        %679 = vmatpush1.msra.mxu0 0.0
        %680 = vmatprep.subr.mxu0 0.0
        %681 = vmatpush1.msra.mxu0 0.0
        %682 = vmatprep.subr.mxu0 0.0
        %683 = vmatpush1.msra.mxu0 0.0
        %684 = vmatprep.subr.mxu0 0.0
        %685 = vmatpush1.msra.mxu0 0.0
        %686 = vmatprep.subr.mxu0 0.0
        %687 = vmatpush1.msra.mxu0 0.0
        %688 = vmatprep.subr.mxu0 0.0
        %689 = vmatpush1.msra.mxu0 0.0
        %690 = vmatprep.subr.mxu0 0.0
        %691 = vmatpush1.msra.mxu0 0.0
        %692 = vmatprep.subr.mxu0 0.0
        %693 = vmatpush1.msra.mxu0 0.0
        %694 = vmatprep.subr.mxu0 0.0
        %695 = vmatpush1.msra.mxu0 0.0
        %696 = vmatprep.subr.mxu0 0.0
        %697 = vmatpush1.msra.mxu0 0.0
        %698 = vmatprep.subr.mxu0 0.0
        %699 = vmatpush1.msra.mxu0 0.0
        %700 = vmatprep.mubr.f32.mxu0 0.0
        %701 = vmatmul.mubr.f32.gmra.mrb[0].mxu0 %v631
        %v702 = vpop.f32.mrb[0].mxu0
        %v703 = vadd.f32 0.0, %v702
        %v704 = vpop.f32.mrb[0].mxu0
        %705 = vmatprep.mubr.f32.mxu0 0.0
        %706 = vmatmul.mubr.f32.gmra.mrb[0].mxu0 %v634
        %v707 = vpop.f32.mrb[0].mxu0
        %v708 = vadd.f32 0.0, %v707
        %v709 = vpop.f32.mrb[0].mxu0
        %710 = vdwg.mxu0
        %v711 = vadd.f32 %v622, %v703
        %v712 = vadd.f32 %v627, %v708
        %v713 = vmul.f32 %v711, %v303
        %v714 = vmul.f32 %v712, %v304
        %s715 = scalar_lea.vmem [#allocation10], 48
        %v716 = vld [vmem:[%s715] sm:$0xff]
        %v717 = vld [vmem:[%s715 + $0x8] sm:$0xff]
        %v719 = vsel %vm311, %v713, 0
        %v722 = vsel %vm311, %v714, 0
        %724 = vmatprep.subr.mxu0 0.0
        %725 = vmatpush1.msra.mxu0 %v716
        %726 = vmatprep.subr.mxu0 0.0
        %727 = vmatpush1.msra.mxu0 %v717
        %728 = vmatprep.subr.mxu0 0.0
        %729 = vmatpush1.msra.mxu0 0.0
        %730 = vmatprep.subr.mxu0 0.0
        %731 = vmatpush1.msra.mxu0 0.0
        %732 = vmatprep.subr.mxu0 0.0
        %733 = vmatpush1.msra.mxu0 0.0
        %734 = vmatprep.subr.mxu0 0.0
        %735 = vmatpush1.msra.mxu0 0.0
        %736 = vmatprep.subr.mxu0 0.0
        %737 = vmatpush1.msra.mxu0 0.0
        %738 = vmatprep.subr.mxu0 0.0
        %739 = vmatpush1.msra.mxu0 0.0
        %740 = vmatprep.subr.mxu0 0.0
        %741 = vmatpush1.msra.mxu0 0.0
        %742 = vmatprep.subr.mxu0 0.0
        %743 = vmatpush1.msra.mxu0 0.0
        %744 = vmatprep.subr.mxu0 0.0
        %745 = vmatpush1.msra.mxu0 0.0
        %746 = vmatprep.subr.mxu0 0.0
        %747 = vmatpush1.msra.mxu0 0.0
        %748 = vmatprep.subr.mxu0 0.0
        %749 = vmatpush1.msra.mxu0 0.0
        %750 = vmatprep.subr.mxu0 0.0
        %751 = vmatpush1.msra.mxu0 0.0
        %752 = vmatprep.subr.mxu0 0.0
        %753 = vmatpush1.msra.mxu0 0.0
        %754 = vmatprep.subr.mxu0 0.0
        %755 = vmatpush1.msra.mxu0 0.0
        %756 = vmatprep.subr.mxu0 0.0
        %757 = vmatpush1.msra.mxu0 0.0
        %758 = vmatprep.subr.mxu0 0.0
        %759 = vmatpush1.msra.mxu0 0.0
        %760 = vmatprep.subr.mxu0 0.0
        %761 = vmatpush1.msra.mxu0 0.0
        %762 = vmatprep.subr.mxu0 0.0
        %763 = vmatpush1.msra.mxu0 0.0
        %764 = vmatprep.subr.mxu0 0.0
        %765 = vmatpush1.msra.mxu0 0.0
        %766 = vmatprep.subr.mxu0 0.0
        %767 = vmatpush1.msra.mxu0 0.0
        %768 = vmatprep.subr.mxu0 0.0
        %769 = vmatpush1.msra.mxu0 0.0
        %770 = vmatprep.subr.mxu0 0.0
        %771 = vmatpush1.msra.mxu0 0.0
        %772 = vmatprep.subr.mxu0 0.0
        %773 = vmatpush1.msra.mxu0 0.0
        %774 = vmatprep.subr.mxu0 0.0
        %775 = vmatpush1.msra.mxu0 0.0
        %776 = vmatprep.subr.mxu0 0.0
        %777 = vmatpush1.msra.mxu0 0.0
        %778 = vmatprep.subr.mxu0 0.0
        %779 = vmatpush1.msra.mxu0 0.0
        %780 = vmatprep.subr.mxu0 0.0
        %781 = vmatpush1.msra.mxu0 0.0
        %782 = vmatprep.subr.mxu0 0.0
        %783 = vmatpush1.msra.mxu0 0.0
        %784 = vmatprep.subr.mxu0 0.0
        %785 = vmatpush1.msra.mxu0 0.0
        %786 = vmatprep.subr.mxu0 0.0
        %787 = vmatpush1.msra.mxu0 0.0
        %788 = vmatprep.mubr.f32.mxu0 0.0
        %789 = vmatmul.mubr.f32.gmra.mrb[0].mxu0 %v719
        %v790 = vpop.f32.mrb[0].mxu0
        %v791 = vadd.f32 0.0, %v790
        %v792 = vpop.f32.mrb[0].mxu0
        %793 = vmatprep.mubr.f32.mxu0 0.0
        %794 = vmatmul.mubr.f32.gmra.mrb[0].mxu0 %v722
        %v795 = vpop.f32.mrb[0].mxu0
        %v796 = vadd.f32 0.0, %v795
        %v797 = vpop.f32.mrb[0].mxu0
        %798 = vdwg.mxu0
        %s799 = scalar_lea.vmem [#allocation10], 64
        %v800 = vld [vmem:[%s799] sm:$0xff]
        %v801 = vld [vmem:[%s799 + $0x8] sm:$0xff]
        %s802 = scalar_lea.vmem [#allocation10], 80
        %v803 = vld [vmem:[%s802] sm:$0xff]
        %v804 = vld [vmem:[%s802 + $0x8] sm:$0xff]
        %805 = vmatprep.subr.mxu0 0.0
        %806 = vmatpush1.msra.mxu0 %v803
        %807 = vmatprep.subr.mxu0 0.0
        %808 = vmatpush1.msra.mxu0 %v804
        %809 = vmatprep.subr.mxu0 0.0
        %810 = vmatpush1.msra.mxu0 0.0
        %811 = vmatprep.subr.mxu0 0.0
        %812 = vmatpush1.msra.mxu0 0.0
        %813 = vmatprep.subr.mxu0 0.0
        %814 = vmatpush1.msra.mxu0 0.0
        %815 = vmatprep.subr.mxu0 0.0
        %816 = vmatpush1.msra.mxu0 0.0
        %817 = vmatprep.subr.mxu0 0.0
        %818 = vmatpush1.msra.mxu0 0.0
        %819 = vmatprep.subr.mxu0 0.0
        %820 = vmatpush1.msra.mxu0 0.0
        %821 = vmatprep.subr.mxu0 0.0
        %822 = vmatpush1.msra.mxu0 0.0
        %823 = vmatprep.subr.mxu0 0.0
        %824 = vmatpush1.msra.mxu0 0.0
        %825 = vmatprep.subr.mxu0 0.0
        %826 = vmatpush1.msra.mxu0 0.0
        %827 = vmatprep.subr.mxu0 0.0
        %828 = vmatpush1.msra.mxu0 0.0
        %829 = vmatprep.subr.mxu0 0.0
        %830 = vmatpush1.msra.mxu0 0.0
        %831 = vmatprep.subr.mxu0 0.0
        %832 = vmatpush1.msra.mxu0 0.0
        %833 = vmatprep.subr.mxu0 0.0
        %834 = vmatpush1.msra.mxu0 0.0
        %835 = vmatprep.subr.mxu0 0.0
        %836 = vmatpush1.msra.mxu0 0.0
        %837 = vmatprep.subr.mxu0 0.0
        %838 = vmatpush1.msra.mxu0 0.0
        %839 = vmatprep.subr.mxu0 0.0
        %840 = vmatpush1.msra.mxu0 0.0
        %841 = vmatprep.subr.mxu0 0.0
        %842 = vmatpush1.msra.mxu0 0.0
        %843 = vmatprep.subr.mxu0 0.0
        %844 = vmatpush1.msra.mxu0 0.0
        %845 = vmatprep.subr.mxu0 0.0
        %846 = vmatpush1.msra.mxu0 0.0
        %847 = vmatprep.subr.mxu0 0.0
        %848 = vmatpush1.msra.mxu0 0.0
        %849 = vmatprep.subr.mxu0 0.0
        %850 = vmatpush1.msra.mxu0 0.0
        %851 = vmatprep.subr.mxu0 0.0
        %852 = vmatpush1.msra.mxu0 0.0
        %853 = vmatprep.subr.mxu0 0.0
        %854 = vmatpush1.msra.mxu0 0.0
        %855 = vmatprep.subr.mxu0 0.0
        %856 = vmatpush1.msra.mxu0 0.0
        %857 = vmatprep.subr.mxu0 0.0
        %858 = vmatpush1.msra.mxu0 0.0
        %859 = vmatprep.subr.mxu0 0.0
        %860 = vmatpush1.msra.mxu0 0.0
        %861 = vmatprep.subr.mxu0 0.0
        %862 = vmatpush1.msra.mxu0 0.0
        %863 = vmatprep.subr.mxu0 0.0
        %864 = vmatpush1.msra.mxu0 0.0
        %865 = vmatprep.subr.mxu0 0.0
        %866 = vmatpush1.msra.mxu0 0.0
        %867 = vmatprep.subr.mxu0 0.0
        %868 = vmatpush1.msra.mxu0 0.0
        %869 = vmatprep.mubr.f32.mxu0 0.0
        %870 = vmatmul.mubr.f32.gmra.mrb[0].mxu0 %v719
        %v871 = vpop.f32.mrb[0].mxu0
        %v872 = vadd.f32 0.0, %v871
        %v873 = vpop.f32.mrb[0].mxu0
        %874 = vmatprep.mubr.f32.mxu0 0.0
        %875 = vmatmul.mubr.f32.gmra.mrb[0].mxu0 %v722
        %v876 = vpop.f32.mrb[0].mxu0
        %v877 = vadd.f32 0.0, %v876
        %v878 = vpop.f32.mrb[0].mxu0
        %879 = vdwg.mxu0
        %880 = vmatprep.subr.mxu0 0.0
        %881 = vmatpush1.msra.mxu0 %v791
        %882 = vmatprep.subr.mxu0 0.0
        %883 = vmatpush1.msra.mxu0 %v796
        %884 = vmatprep.subr.mxu0 0.0
        %885 = vmatpush1.msra.mxu0 0.0
        %886 = vmatprep.subr.mxu0 0.0
        %887 = vmatpush1.msra.mxu0 0.0
        %888 = vmatprep.subr.mxu0 0.0
        %889 = vmatpush1.msra.mxu0 0.0
        %890 = vmatprep.subr.mxu0 0.0
        %891 = vmatpush1.msra.mxu0 0.0
        %892 = vmatprep.subr.mxu0 0.0
        %893 = vmatpush1.msra.mxu0 0.0
        %894 = vmatprep.subr.mxu0 0.0
        %895 = vmatpush1.msra.mxu0 0.0
        %896 = vmatprep.subr.mxu0 0.0
        %897 = vmatpush1.msra.mxu0 0.0
        %898 = vmatprep.subr.mxu0 0.0
        %899 = vmatpush1.msra.mxu0 0.0
        %900 = vmatprep.subr.mxu0 0.0
        %901 = vmatpush1.msra.mxu0 0.0
        %902 = vmatprep.subr.mxu0 0.0
        %903 = vmatpush1.msra.mxu0 0.0
        %904 = vmatprep.subr.mxu0 0.0
        %905 = vmatpush1.msra.mxu0 0.0
        %906 = vmatprep.subr.mxu0 0.0
        %907 = vmatpush1.msra.mxu0 0.0
        %908 = vmatprep.subr.mxu0 0.0
        %909 = vmatpush1.msra.mxu0 0.0
        %910 = vmatprep.subr.mxu0 0.0
        %911 = vmatpush1.msra.mxu0 0.0
        %912 = vmatprep.subr.mxu0 0.0
        %913 = vmatpush1.msra.mxu0 0.0
        %914 = vmatprep.subr.mxu0 0.0
        %915 = vmatpush1.msra.mxu0 0.0
        %916 = vmatprep.subr.mxu0 0.0
        %917 = vmatpush1.msra.mxu0 0.0
        %918 = vmatprep.subr.mxu0 0.0
        %919 = vmatpush1.msra.mxu0 0.0
        %920 = vmatprep.subr.mxu0 0.0
        %921 = vmatpush1.msra.mxu0 0.0
        %922 = vmatprep.subr.mxu0 0.0
        %923 = vmatpush1.msra.mxu0 0.0
        %924 = vmatprep.subr.mxu0 0.0
        %925 = vmatpush1.msra.mxu0 0.0
        %926 = vmatprep.subr.mxu0 0.0
        %927 = vmatpush1.msra.mxu0 0.0
        %928 = vmatprep.subr.mxu0 0.0
        %929 = vmatpush1.msra.mxu0 0.0
        %930 = vmatprep.subr.mxu0 0.0
        %931 = vmatpush1.msra.mxu0 0.0
        %932 = vmatprep.subr.mxu0 0.0
        %933 = vmatpush1.msra.mxu0 0.0
        %934 = vmatprep.subr.mxu0 0.0
        %935 = vmatpush1.msra.mxu0 0.0
        %936 = vmatprep.subr.mxu0 0.0
        %937 = vmatpush1.msra.mxu0 0.0
        %938 = vmatprep.subr.mxu0 0.0
        %939 = vmatpush1.msra.mxu0 0.0
        %940 = vmatprep.subr.mxu0 0.0
        %941 = vmatpush1.msra.mxu0 0.0
        %942 = vmatprep.subr.mxu0 0.0
        %943 = vmatpush1.msra.mxu0 0.0
        %944 = vmatprep.mubr.f32.mxu0 0.0
        %945 = vmatmul.mubr.f32.gmra.mrb[0].mxu0 %v475
        %v946 = vpop.f32.mrb[0].mxu0
        %v947 = vadd.f32 0.0, %v946
        %v948 = vpop.f32.mrb[0].mxu0
        %949 = vmatprep.mubr.f32.mxu0 0.0
        %950 = vmatmul.mubr.f32.gmra.mrb[0].mxu0 %v478
        %v951 = vpop.f32.mrb[0].mxu0
        %v952 = vadd.f32 0.0, %v951
        %v953 = vpop.f32.mrb[0].mxu0
        %954 = vdwg.mxu0
        %955 = vmatprep.subr.mxu0 0.0
        %956 = vmatpush1.msra.mxu0 %v800
        %957 = vmatprep.subr.mxu0 0.0
        %958 = vmatpush1.msra.mxu0 %v801
        %959 = vmatprep.subr.mxu0 0.0
        %960 = vmatpush1.msra.mxu0 0.0
        %961 = vmatprep.subr.mxu0 0.0
        %962 = vmatpush1.msra.mxu0 0.0
        %963 = vmatprep.subr.mxu0 0.0
        %964 = vmatpush1.msra.mxu0 0.0
        %965 = vmatprep.subr.mxu0 0.0
        %966 = vmatpush1.msra.mxu0 0.0
        %967 = vmatprep.subr.mxu0 0.0
        %968 = vmatpush1.msra.mxu0 0.0
        %969 = vmatprep.subr.mxu0 0.0
        %970 = vmatpush1.msra.mxu0 0.0
        %971 = vmatprep.subr.mxu0 0.0
        %972 = vmatpush1.msra.mxu0 0.0
        %973 = vmatprep.subr.mxu0 0.0
        %974 = vmatpush1.msra.mxu0 0.0
        %975 = vmatprep.subr.mxu0 0.0
        %976 = vmatpush1.msra.mxu0 0.0
        %977 = vmatprep.subr.mxu0 0.0
        %978 = vmatpush1.msra.mxu0 0.0
        %979 = vmatprep.subr.mxu0 0.0
        %980 = vmatpush1.msra.mxu0 0.0
        %981 = vmatprep.subr.mxu0 0.0
        %982 = vmatpush1.msra.mxu0 0.0
        %983 = vmatprep.subr.mxu0 0.0
        %984 = vmatpush1.msra.mxu0 0.0
        %985 = vmatprep.subr.mxu0 0.0
        %986 = vmatpush1.msra.mxu0 0.0
        %987 = vmatprep.subr.mxu0 0.0
        %988 = vmatpush1.msra.mxu0 0.0
        %989 = vmatprep.subr.mxu0 0.0
        %990 = vmatpush1.msra.mxu0 0.0
        %991 = vmatprep.subr.mxu0 0.0
        %992 = vmatpush1.msra.mxu0 0.0
        %993 = vmatprep.subr.mxu0 0.0
        %994 = vmatpush1.msra.mxu0 0.0
        %995 = vmatprep.subr.mxu0 0.0
        %996 = vmatpush1.msra.mxu0 0.0
        %997 = vmatprep.subr.mxu0 0.0
        %998 = vmatpush1.msra.mxu0 0.0
        %999 = vmatprep.subr.mxu0 0.0
        %1000 = vmatpush1.msra.mxu0 0.0
        %1001 = vmatprep.subr.mxu0 0.0
        %1002 = vmatpush1.msra.mxu0 0.0
        %1003 = vmatprep.subr.mxu0 0.0
        %1004 = vmatpush1.msra.mxu0 0.0
        %1005 = vmatprep.subr.mxu0 0.0
        %1006 = vmatpush1.msra.mxu0 0.0
        %1007 = vmatprep.subr.mxu0 0.0
        %1008 = vmatpush1.msra.mxu0 0.0
        %1009 = vmatprep.subr.mxu0 0.0
        %1010 = vmatpush1.msra.mxu0 0.0
        %1011 = vmatprep.subr.mxu0 0.0
        %1012 = vmatpush1.msra.mxu0 0.0
        %1013 = vmatprep.subr.mxu0 0.0
        %1014 = vmatpush1.msra.mxu0 0.0
        %1015 = vmatprep.subr.mxu0 0.0
        %1016 = vmatpush1.msra.mxu0 0.0
        %1017 = vmatprep.subr.mxu0 0.0
        %1018 = vmatpush1.msra.mxu0 0.0
        %1019 = vmatprep.mubr.f32.mxu0 0.0
        %1020 = vmatmul.mubr.f32.gmra.mrb[0].mxu0 %v719
        %v1021 = vpop.f32.mrb[0].mxu0
        %v1022 = vadd.f32 %v947, %v1021
        %v1023 = vpop.f32.mrb[0].mxu0
        %1024 = vmatprep.mubr.f32.mxu0 0.0
        %1025 = vmatmul.mubr.f32.gmra.mrb[0].mxu0 %v722
        %v1026 = vpop.f32.mrb[0].mxu0
        %v1027 = vadd.f32 %v952, %v1026
        %v1028 = vpop.f32.mrb[0].mxu0
        %1029 = vdwg.mxu0
        %1030 = vmatprep.subr.mxu0 0.0
        %1031 = vmatpush1.msra.mxu0 %v872
        %1032 = vmatprep.subr.mxu0 0.0
        %1033 = vmatpush1.msra.mxu0 %v877
        %1034 = vmatprep.subr.mxu0 0.0
        %1035 = vmatpush1.msra.mxu0 0.0
        %1036 = vmatprep.subr.mxu0 0.0
        %1037 = vmatpush1.msra.mxu0 0.0
        %1038 = vmatprep.subr.mxu0 0.0
        %1039 = vmatpush1.msra.mxu0 0.0
        %1040 = vmatprep.subr.mxu0 0.0
        %1041 = vmatpush1.msra.mxu0 0.0
        %1042 = vmatprep.subr.mxu0 0.0
        %1043 = vmatpush1.msra.mxu0 0.0
        %1044 = vmatprep.subr.mxu0 0.0
        %1045 = vmatpush1.msra.mxu0 0.0
        %1046 = vmatprep.subr.mxu0 0.0
        %1047 = vmatpush1.msra.mxu0 0.0
        %1048 = vmatprep.subr.mxu0 0.0
        %1049 = vmatpush1.msra.mxu0 0.0
        %1050 = vmatprep.subr.mxu0 0.0
        %1051 = vmatpush1.msra.mxu0 0.0
        %1052 = vmatprep.subr.mxu0 0.0
        %1053 = vmatpush1.msra.mxu0 0.0
        %1054 = vmatprep.subr.mxu0 0.0
        %1055 = vmatpush1.msra.mxu0 0.0
        %1056 = vmatprep.subr.mxu0 0.0
        %1057 = vmatpush1.msra.mxu0 0.0
        %1058 = vmatprep.subr.mxu0 0.0
        %1059 = vmatpush1.msra.mxu0 0.0
        %1060 = vmatprep.subr.mxu0 0.0
        %1061 = vmatpush1.msra.mxu0 0.0
        %1062 = vmatprep.subr.mxu0 0.0
        %1063 = vmatpush1.msra.mxu0 0.0
        %1064 = vmatprep.subr.mxu0 0.0
        %1065 = vmatpush1.msra.mxu0 0.0
        %1066 = vmatprep.subr.mxu0 0.0
        %1067 = vmatpush1.msra.mxu0 0.0
        %1068 = vmatprep.subr.mxu0 0.0
        %1069 = vmatpush1.msra.mxu0 0.0
        %1070 = vmatprep.subr.mxu0 0.0
        %1071 = vmatpush1.msra.mxu0 0.0
        %1072 = vmatprep.subr.mxu0 0.0
        %1073 = vmatpush1.msra.mxu0 0.0
        %1074 = vmatprep.subr.mxu0 0.0
        %1075 = vmatpush1.msra.mxu0 0.0
        %1076 = vmatprep.subr.mxu0 0.0
        %1077 = vmatpush1.msra.mxu0 0.0
        %1078 = vmatprep.subr.mxu0 0.0
        %1079 = vmatpush1.msra.mxu0 0.0
        %1080 = vmatprep.subr.mxu0 0.0
        %1081 = vmatpush1.msra.mxu0 0.0
        %1082 = vmatprep.subr.mxu0 0.0
        %1083 = vmatpush1.msra.mxu0 0.0
        %1084 = vmatprep.subr.mxu0 0.0
        %1085 = vmatpush1.msra.mxu0 0.0
        %1086 = vmatprep.subr.mxu0 0.0
        %1087 = vmatpush1.msra.mxu0 0.0
        %1088 = vmatprep.subr.mxu0 0.0
        %1089 = vmatpush1.msra.mxu0 0.0
        %1090 = vmatprep.subr.mxu0 0.0
        %1091 = vmatpush1.msra.mxu0 0.0
        %1092 = vmatprep.subr.mxu0 0.0
        %1093 = vmatpush1.msra.mxu0 0.0
        %1094 = vmatprep.mubr.f32.mxu0 0.0
        %1095 = vmatmul.mubr.f32.gmra.mrb[0].mxu0 %v631
        %v1096 = vpop.f32.mrb[0].mxu0
        %v1097 = vadd.f32 0.0, %v1096
        %v1098 = vpop.f32.mrb[0].mxu0
        %1099 = vmatprep.mubr.f32.mxu0 0.0
        %1100 = vmatmul.mubr.f32.gmra.mrb[0].mxu0 %v634
        %v1101 = vpop.f32.mrb[0].mxu0
        %v1102 = vadd.f32 0.0, %v1101
        %v1103 = vpop.f32.mrb[0].mxu0
        %1104 = vdwg.mxu0
        %v1105 = vadd.f32 %v1022, %v1097
        %v1106 = vadd.f32 %v1027, %v1102
        %v1107 = vmul.f32 %v1105, %v303
        %v1108 = vmul.f32 %v1106, %v304
        %s1109 = scalar_lea.vmem [#allocation10], 96
        %v1110 = vld [vmem:[%s1109] sm:$0xff]
        %v1111 = vld [vmem:[%s1109 + $0x8] sm:$0xff]
        %v1113 = vsel %vm311, %v1107, 0
        %v1116 = vsel %vm311, %v1108, 0
        %1118 = vmatprep.subr.mxu0 0.0
        %1119 = vmatpush1.msra.mxu0 %v1110
        %1120 = vmatprep.subr.mxu0 0.0
        %1121 = vmatpush1.msra.mxu0 %v1111
        %1122 = vmatprep.subr.mxu0 0.0
        %1123 = vmatpush1.msra.mxu0 0.0
        %1124 = vmatprep.subr.mxu0 0.0
        %1125 = vmatpush1.msra.mxu0 0.0
        %1126 = vmatprep.subr.mxu0 0.0
        %1127 = vmatpush1.msra.mxu0 0.0
        %1128 = vmatprep.subr.mxu0 0.0
        %1129 = vmatpush1.msra.mxu0 0.0
        %1130 = vmatprep.subr.mxu0 0.0
        %1131 = vmatpush1.msra.mxu0 0.0
        %1132 = vmatprep.subr.mxu0 0.0
        %1133 = vmatpush1.msra.mxu0 0.0
        %1134 = vmatprep.subr.mxu0 0.0
        %1135 = vmatpush1.msra.mxu0 0.0
        %1136 = vmatprep.subr.mxu0 0.0
        %1137 = vmatpush1.msra.mxu0 0.0
        %1138 = vmatprep.subr.mxu0 0.0
        %1139 = vmatpush1.msra.mxu0 0.0
        %1140 = vmatprep.subr.mxu0 0.0
        %1141 = vmatpush1.msra.mxu0 0.0
        %1142 = vmatprep.subr.mxu0 0.0
        %1143 = vmatpush1.msra.mxu0 0.0
        %1144 = vmatprep.subr.mxu0 0.0
        %1145 = vmatpush1.msra.mxu0 0.0
        %1146 = vmatprep.subr.mxu0 0.0
        %1147 = vmatpush1.msra.mxu0 0.0
        %1148 = vmatprep.subr.mxu0 0.0
        %1149 = vmatpush1.msra.mxu0 0.0
        %1150 = vmatprep.subr.mxu0 0.0
        %1151 = vmatpush1.msra.mxu0 0.0
        %1152 = vmatprep.subr.mxu0 0.0
        %1153 = vmatpush1.msra.mxu0 0.0
        %1154 = vmatprep.subr.mxu0 0.0
        %1155 = vmatpush1.msra.mxu0 0.0
        %1156 = vmatprep.subr.mxu0 0.0
        %1157 = vmatpush1.msra.mxu0 0.0
        %1158 = vmatprep.subr.mxu0 0.0
        %1159 = vmatpush1.msra.mxu0 0.0
        %1160 = vmatprep.subr.mxu0 0.0
        %1161 = vmatpush1.msra.mxu0 0.0
        %1162 = vmatprep.subr.mxu0 0.0
        %1163 = vmatpush1.msra.mxu0 0.0
        %1164 = vmatprep.subr.mxu0 0.0
        %1165 = vmatpush1.msra.mxu0 0.0
        %1166 = vmatprep.subr.mxu0 0.0
        %1167 = vmatpush1.msra.mxu0 0.0
        %1168 = vmatprep.subr.mxu0 0.0
        %1169 = vmatpush1.msra.mxu0 0.0
        %1170 = vmatprep.subr.mxu0 0.0
        %1171 = vmatpush1.msra.mxu0 0.0
        %1172 = vmatprep.subr.mxu0 0.0
        %1173 = vmatpush1.msra.mxu0 0.0
        %1174 = vmatprep.subr.mxu0 0.0
        %1175 = vmatpush1.msra.mxu0 0.0
        %1176 = vmatprep.subr.mxu0 0.0
        %1177 = vmatpush1.msra.mxu0 0.0
        %1178 = vmatprep.subr.mxu0 0.0
        %1179 = vmatpush1.msra.mxu0 0.0
        %1180 = vmatprep.subr.mxu0 0.0
        %1181 = vmatpush1.msra.mxu0 0.0
        %1182 = vmatprep.mubr.f32.mxu0 0.0
        %1183 = vmatmul.mubr.f32.gmra.mrb[0].mxu0 %v1113
        %v1184 = vpop.f32.mrb[0].mxu0
        %v1185 = vadd.f32 0.0, %v1184
        %v1186 = vpop.f32.mrb[0].mxu0
        %1187 = vmatprep.mubr.f32.mxu0 0.0
        %1188 = vmatmul.mubr.f32.gmra.mrb[0].mxu0 %v1116
        %v1189 = vpop.f32.mrb[0].mxu0
        %v1190 = vadd.f32 0.0, %v1189
        %v1191 = vpop.f32.mrb[0].mxu0
        %1192 = vdwg.mxu0
        %s1193 = scalar_lea.vmem [#allocation10], 112
        %v1194 = vld [vmem:[%s1193] sm:$0xff]
        %v1195 = vld [vmem:[%s1193 + $0x8] sm:$0xff]
        %s1196 = scalar_lea.vmem [#allocation10], 128
        %v1197 = vld [vmem:[%s1196] sm:$0xff]
        %v1198 = vld [vmem:[%s1196 + $0x8] sm:$0xff]
        %1199 = vmatprep.subr.mxu0 0.0
        %1200 = vmatpush1.msra.mxu0 %v1197
        %1201 = vmatprep.subr.mxu0 0.0
        %1202 = vmatpush1.msra.mxu0 %v1198
        %1203 = vmatprep.subr.mxu0 0.0
        %1204 = vmatpush1.msra.mxu0 0.0
        %1205 = vmatprep.subr.mxu0 0.0
        %1206 = vmatpush1.msra.mxu0 0.0
        %1207 = vmatprep.subr.mxu0 0.0
        %1208 = vmatpush1.msra.mxu0 0.0
        %1209 = vmatprep.subr.mxu0 0.0
        %1210 = vmatpush1.msra.mxu0 0.0
        %1211 = vmatprep.subr.mxu0 0.0
        %1212 = vmatpush1.msra.mxu0 0.0
        %1213 = vmatprep.subr.mxu0 0.0
        %1214 = vmatpush1.msra.mxu0 0.0
        %1215 = vmatprep.subr.mxu0 0.0
        %1216 = vmatpush1.msra.mxu0 0.0
        %1217 = vmatprep.subr.mxu0 0.0
        %1218 = vmatpush1.msra.mxu0 0.0
        %1219 = vmatprep.subr.mxu0 0.0
        %1220 = vmatpush1.msra.mxu0 0.0
        %1221 = vmatprep.subr.mxu0 0.0
        %1222 = vmatpush1.msra.mxu0 0.0
        %1223 = vmatprep.subr.mxu0 0.0
        %1224 = vmatpush1.msra.mxu0 0.0
        %1225 = vmatprep.subr.mxu0 0.0
        %1226 = vmatpush1.msra.mxu0 0.0
        %1227 = vmatprep.subr.mxu0 0.0
        %1228 = vmatpush1.msra.mxu0 0.0
        %1229 = vmatprep.subr.mxu0 0.0
        %1230 = vmatpush1.msra.mxu0 0.0
        %1231 = vmatprep.subr.mxu0 0.0
        %1232 = vmatpush1.msra.mxu0 0.0
        %1233 = vmatprep.subr.mxu0 0.0
        %1234 = vmatpush1.msra.mxu0 0.0
        %1235 = vmatprep.subr.mxu0 0.0
        %1236 = vmatpush1.msra.mxu0 0.0
        %1237 = vmatprep.subr.mxu0 0.0
        %1238 = vmatpush1.msra.mxu0 0.0
        %1239 = vmatprep.subr.mxu0 0.0
        %1240 = vmatpush1.msra.mxu0 0.0
        %1241 = vmatprep.subr.mxu0 0.0
        %1242 = vmatpush1.msra.mxu0 0.0
        %1243 = vmatprep.subr.mxu0 0.0
        %1244 = vmatpush1.msra.mxu0 0.0
        %1245 = vmatprep.subr.mxu0 0.0
        %1246 = vmatpush1.msra.mxu0 0.0
        %1247 = vmatprep.subr.mxu0 0.0
        %1248 = vmatpush1.msra.mxu0 0.0
        %1249 = vmatprep.subr.mxu0 0.0
        %1250 = vmatpush1.msra.mxu0 0.0
        %1251 = vmatprep.subr.mxu0 0.0
        %1252 = vmatpush1.msra.mxu0 0.0
        %1253 = vmatprep.subr.mxu0 0.0
        %1254 = vmatpush1.msra.mxu0 0.0
        %1255 = vmatprep.subr.mxu0 0.0
        %1256 = vmatpush1.msra.mxu0 0.0
        %1257 = vmatprep.subr.mxu0 0.0
        %1258 = vmatpush1.msra.mxu0 0.0
        %1259 = vmatprep.subr.mxu0 0.0
        %1260 = vmatpush1.msra.mxu0 0.0
        %1261 = vmatprep.subr.mxu0 0.0
        %1262 = vmatpush1.msra.mxu0 0.0
        %1263 = vmatprep.mubr.f32.mxu0 0.0
        %1264 = vmatmul.mubr.f32.gmra.mrb[0].mxu0 %v1113
        %v1265 = vpop.f32.mrb[0].mxu0
        %v1266 = vadd.f32 0.0, %v1265
        %v1267 = vpop.f32.mrb[0].mxu0
        %1268 = vmatprep.mubr.f32.mxu0 0.0
        %1269 = vmatmul.mubr.f32.gmra.mrb[0].mxu0 %v1116
        %v1270 = vpop.f32.mrb[0].mxu0
        %v1271 = vadd.f32 0.0, %v1270
        %v1272 = vpop.f32.mrb[0].mxu0
        %1273 = vdwg.mxu0
        %1274 = vmatprep.subr.mxu0 0.0
        %1275 = vmatpush1.msra.mxu0 %v1185
        %1276 = vmatprep.subr.mxu0 0.0
        %1277 = vmatpush1.msra.mxu0 %v1190
        %1278 = vmatprep.subr.mxu0 0.0
        %1279 = vmatpush1.msra.mxu0 0.0
        %1280 = vmatprep.subr.mxu0 0.0
        %1281 = vmatpush1.msra.mxu0 0.0
        %1282 = vmatprep.subr.mxu0 0.0
        %1283 = vmatpush1.msra.mxu0 0.0
        %1284 = vmatprep.subr.mxu0 0.0
        %1285 = vmatpush1.msra.mxu0 0.0
        %1286 = vmatprep.subr.mxu0 0.0
        %1287 = vmatpush1.msra.mxu0 0.0
        %1288 = vmatprep.subr.mxu0 0.0
        %1289 = vmatpush1.msra.mxu0 0.0
        %1290 = vmatprep.subr.mxu0 0.0
        %1291 = vmatpush1.msra.mxu0 0.0
        %1292 = vmatprep.subr.mxu0 0.0
        %1293 = vmatpush1.msra.mxu0 0.0
        %1294 = vmatprep.subr.mxu0 0.0
        %1295 = vmatpush1.msra.mxu0 0.0
        %1296 = vmatprep.subr.mxu0 0.0
        %1297 = vmatpush1.msra.mxu0 0.0
        %1298 = vmatprep.subr.mxu0 0.0
        %1299 = vmatpush1.msra.mxu0 0.0
        %1300 = vmatprep.subr.mxu0 0.0
        %1301 = vmatpush1.msra.mxu0 0.0
        %1302 = vmatprep.subr.mxu0 0.0
        %1303 = vmatpush1.msra.mxu0 0.0
        %1304 = vmatprep.subr.mxu0 0.0
        %1305 = vmatpush1.msra.mxu0 0.0
        %1306 = vmatprep.subr.mxu0 0.0
        %1307 = vmatpush1.msra.mxu0 0.0
        %1308 = vmatprep.subr.mxu0 0.0
        %1309 = vmatpush1.msra.mxu0 0.0
        %1310 = vmatprep.subr.mxu0 0.0
        %1311 = vmatpush1.msra.mxu0 0.0
        %1312 = vmatprep.subr.mxu0 0.0
        %1313 = vmatpush1.msra.mxu0 0.0
        %1314 = vmatprep.subr.mxu0 0.0
        %1315 = vmatpush1.msra.mxu0 0.0
        %1316 = vmatprep.subr.mxu0 0.0
        %1317 = vmatpush1.msra.mxu0 0.0
        %1318 = vmatprep.subr.mxu0 0.0
        %1319 = vmatpush1.msra.mxu0 0.0
        %1320 = vmatprep.subr.mxu0 0.0
        %1321 = vmatpush1.msra.mxu0 0.0
        %1322 = vmatprep.subr.mxu0 0.0
        %1323 = vmatpush1.msra.mxu0 0.0
        %1324 = vmatprep.subr.mxu0 0.0
        %1325 = vmatpush1.msra.mxu0 0.0
        %1326 = vmatprep.subr.mxu0 0.0
        %1327 = vmatpush1.msra.mxu0 0.0
        %1328 = vmatprep.subr.mxu0 0.0
        %1329 = vmatpush1.msra.mxu0 0.0
        %1330 = vmatprep.subr.mxu0 0.0
        %1331 = vmatpush1.msra.mxu0 0.0
        %1332 = vmatprep.subr.mxu0 0.0
        %1333 = vmatpush1.msra.mxu0 0.0
        %1334 = vmatprep.subr.mxu0 0.0
        %1335 = vmatpush1.msra.mxu0 0.0
        %1336 = vmatprep.subr.mxu0 0.0
        %1337 = vmatpush1.msra.mxu0 0.0
        %1338 = vmatprep.mubr.f32.mxu0 0.0
        %1339 = vmatmul.mubr.f32.gmra.mrb[0].mxu0 %v475
        %v1340 = vpop.f32.mrb[0].mxu0
        %v1341 = vadd.f32 0.0, %v1340
        %v1342 = vpop.f32.mrb[0].mxu0
        %1343 = vmatprep.mubr.f32.mxu0 0.0
        %1344 = vmatmul.mubr.f32.gmra.mrb[0].mxu0 %v478
        %v1345 = vpop.f32.mrb[0].mxu0
        %v1346 = vadd.f32 0.0, %v1345
        %v1347 = vpop.f32.mrb[0].mxu0
        %1348 = vdwg.mxu0
        %1349 = vmatprep.subr.mxu0 0.0
        %1350 = vmatpush1.msra.mxu0 %v1194
        %1351 = vmatprep.subr.mxu0 0.0
        %1352 = vmatpush1.msra.mxu0 %v1195
        %1353 = vmatprep.subr.mxu0 0.0
        %1354 = vmatpush1.msra.mxu0 0.0
        %1355 = vmatprep.subr.mxu0 0.0
        %1356 = vmatpush1.msra.mxu0 0.0
        %1357 = vmatprep.subr.mxu0 0.0
        %1358 = vmatpush1.msra.mxu0 0.0
        %1359 = vmatprep.subr.mxu0 0.0
        %1360 = vmatpush1.msra.mxu0 0.0
        %1361 = vmatprep.subr.mxu0 0.0
        %1362 = vmatpush1.msra.mxu0 0.0
        %1363 = vmatprep.subr.mxu0 0.0
        %1364 = vmatpush1.msra.mxu0 0.0
        %1365 = vmatprep.subr.mxu0 0.0
        %1366 = vmatpush1.msra.mxu0 0.0
        %1367 = vmatprep.subr.mxu0 0.0
        %1368 = vmatpush1.msra.mxu0 0.0
        %1369 = vmatprep.subr.mxu0 0.0
        %1370 = vmatpush1.msra.mxu0 0.0
        %1371 = vmatprep.subr.mxu0 0.0
        %1372 = vmatpush1.msra.mxu0 0.0
        %1373 = vmatprep.subr.mxu0 0.0
        %1374 = vmatpush1.msra.mxu0 0.0
        %1375 = vmatprep.subr.mxu0 0.0
        %1376 = vmatpush1.msra.mxu0 0.0
        %1377 = vmatprep.subr.mxu0 0.0
        %1378 = vmatpush1.msra.mxu0 0.0
        %1379 = vmatprep.subr.mxu0 0.0
        %1380 = vmatpush1.msra.mxu0 0.0
        %1381 = vmatprep.subr.mxu0 0.0
        %1382 = vmatpush1.msra.mxu0 0.0
        %1383 = vmatprep.subr.mxu0 0.0
        %1384 = vmatpush1.msra.mxu0 0.0
        %1385 = vmatprep.subr.mxu0 0.0
        %1386 = vmatpush1.msra.mxu0 0.0
        %1387 = vmatprep.subr.mxu0 0.0
        %1388 = vmatpush1.msra.mxu0 0.0
        %1389 = vmatprep.subr.mxu0 0.0
        %1390 = vmatpush1.msra.mxu0 0.0
        %1391 = vmatprep.subr.mxu0 0.0
        %1392 = vmatpush1.msra.mxu0 0.0
        %1393 = vmatprep.subr.mxu0 0.0
        %1394 = vmatpush1.msra.mxu0 0.0
        %1395 = vmatprep.subr.mxu0 0.0
        %1396 = vmatpush1.msra.mxu0 0.0
        %1397 = vmatprep.subr.mxu0 0.0
        %1398 = vmatpush1.msra.mxu0 0.0
        %1399 = vmatprep.subr.mxu0 0.0
        %1400 = vmatpush1.msra.mxu0 0.0
        %1401 = vmatprep.subr.mxu0 0.0
        %1402 = vmatpush1.msra.mxu0 0.0
        %1403 = vmatprep.subr.mxu0 0.0
        %1404 = vmatpush1.msra.mxu0 0.0
        %1405 = vmatprep.subr.mxu0 0.0
        %1406 = vmatpush1.msra.mxu0 0.0
        %1407 = vmatprep.subr.mxu0 0.0
        %1408 = vmatpush1.msra.mxu0 0.0
        %1409 = vmatprep.subr.mxu0 0.0
        %1410 = vmatpush1.msra.mxu0 0.0
        %1411 = vmatprep.subr.mxu0 0.0
        %1412 = vmatpush1.msra.mxu0 0.0
        %1413 = vmatprep.mubr.f32.mxu0 0.0
        %1414 = vmatmul.mubr.f32.gmra.mrb[0].mxu0 %v1113
        %v1415 = vpop.f32.mrb[0].mxu0
        %v1416 = vadd.f32 %v1341, %v1415
        %v1417 = vpop.f32.mrb[0].mxu0
        %1418 = vmatprep.mubr.f32.mxu0 0.0
        %1419 = vmatmul.mubr.f32.gmra.mrb[0].mxu0 %v1116
        %v1420 = vpop.f32.mrb[0].mxu0
        %v1421 = vadd.f32 %v1346, %v1420
        %v1422 = vpop.f32.mrb[0].mxu0
        %1423 = vdwg.mxu0
        %1424 = vmatprep.subr.mxu0 0.0
        %1425 = vmatpush1.msra.mxu0 %v1266
        %1426 = vmatprep.subr.mxu0 0.0
        %1427 = vmatpush1.msra.mxu0 %v1271
        %1428 = vmatprep.subr.mxu0 0.0
        %1429 = vmatpush1.msra.mxu0 0.0
        %1430 = vmatprep.subr.mxu0 0.0
        %1431 = vmatpush1.msra.mxu0 0.0
        %1432 = vmatprep.subr.mxu0 0.0
        %1433 = vmatpush1.msra.mxu0 0.0
        %1434 = vmatprep.subr.mxu0 0.0
        %1435 = vmatpush1.msra.mxu0 0.0
        %1436 = vmatprep.subr.mxu0 0.0
        %1437 = vmatpush1.msra.mxu0 0.0
        %1438 = vmatprep.subr.mxu0 0.0
        %1439 = vmatpush1.msra.mxu0 0.0
        %1440 = vmatprep.subr.mxu0 0.0
        %1441 = vmatpush1.msra.mxu0 0.0
        %1442 = vmatprep.subr.mxu0 0.0
        %1443 = vmatpush1.msra.mxu0 0.0
        %1444 = vmatprep.subr.mxu0 0.0
        %1445 = vmatpush1.msra.mxu0 0.0
        %1446 = vmatprep.subr.mxu0 0.0
        %1447 = vmatpush1.msra.mxu0 0.0
        %1448 = vmatprep.subr.mxu0 0.0
        %1449 = vmatpush1.msra.mxu0 0.0
        %1450 = vmatprep.subr.mxu0 0.0
        %1451 = vmatpush1.msra.mxu0 0.0
        %1452 = vmatprep.subr.mxu0 0.0
        %1453 = vmatpush1.msra.mxu0 0.0
        %1454 = vmatprep.subr.mxu0 0.0
        %1455 = vmatpush1.msra.mxu0 0.0
        %1456 = vmatprep.subr.mxu0 0.0
        %1457 = vmatpush1.msra.mxu0 0.0
        %1458 = vmatprep.subr.mxu0 0.0
        %1459 = vmatpush1.msra.mxu0 0.0
        %1460 = vmatprep.subr.mxu0 0.0
        %1461 = vmatpush1.msra.mxu0 0.0
        %1462 = vmatprep.subr.mxu0 0.0
        %1463 = vmatpush1.msra.mxu0 0.0
        %1464 = vmatprep.subr.mxu0 0.0
        %1465 = vmatpush1.msra.mxu0 0.0
        %1466 = vmatprep.subr.mxu0 0.0
        %1467 = vmatpush1.msra.mxu0 0.0
        %1468 = vmatprep.subr.mxu0 0.0
        %1469 = vmatpush1.msra.mxu0 0.0
        %1470 = vmatprep.subr.mxu0 0.0
        %1471 = vmatpush1.msra.mxu0 0.0
        %1472 = vmatprep.subr.mxu0 0.0
        %1473 = vmatpush1.msra.mxu0 0.0
        %1474 = vmatprep.subr.mxu0 0.0
        %1475 = vmatpush1.msra.mxu0 0.0
        %1476 = vmatprep.subr.mxu0 0.0
        %1477 = vmatpush1.msra.mxu0 0.0
        %1478 = vmatprep.subr.mxu0 0.0
        %1479 = vmatpush1.msra.mxu0 0.0
        %1480 = vmatprep.subr.mxu0 0.0
        %1481 = vmatpush1.msra.mxu0 0.0
        %1482 = vmatprep.subr.mxu0 0.0
        %1483 = vmatpush1.msra.mxu0 0.0
        %1484 = vmatprep.subr.mxu0 0.0
        %1485 = vmatpush1.msra.mxu0 0.0
        %1486 = vmatprep.subr.mxu0 0.0
        %1487 = vmatpush1.msra.mxu0 0.0
        %1488 = vmatprep.mubr.f32.mxu0 0.0
        %1489 = vmatmul.mubr.f32.gmra.mrb[0].mxu0 %v631
        %v1490 = vpop.f32.mrb[0].mxu0
        %v1491 = vadd.f32 0.0, %v1490
        %v1492 = vpop.f32.mrb[0].mxu0
        %1493 = vmatprep.mubr.f32.mxu0 0.0
        %1494 = vmatmul.mubr.f32.gmra.mrb[0].mxu0 %v634
        %v1495 = vpop.f32.mrb[0].mxu0
        %v1496 = vadd.f32 0.0, %v1495
        %v1497 = vpop.f32.mrb[0].mxu0
        %1498 = vdwg.mxu0
        %v1499 = vadd.f32 %v1416, %v1491
        %v1500 = vadd.f32 %v1421, %v1496
        %v1501 = vmul.f32 %v1499, %v303
        %v1502 = vmul.f32 %v1500, %v304
        %s1503 = scalar_lea.vmem [#allocation10], 144
        %v1504 = vld [vmem:[%s1503] sm:$0xff]
        %v1505 = vld [vmem:[%s1503 + $0x8] sm:$0xff]
        %v1507 = vsel %vm311, %v1501, 0
        %v1510 = vsel %vm311, %v1502, 0
        %1512 = vmatprep.subr.mxu0 0.0
        %1513 = vmatpush1.msra.mxu0 %v1504
        %1514 = vmatprep.subr.mxu0 0.0
        %1515 = vmatpush1.msra.mxu0 %v1505
        %1516 = vmatprep.subr.mxu0 0.0
        %1517 = vmatpush1.msra.mxu0 0.0
        %1518 = vmatprep.subr.mxu0 0.0
        %1519 = vmatpush1.msra.mxu0 0.0
        %1520 = vmatprep.subr.mxu0 0.0
        %1521 = vmatpush1.msra.mxu0 0.0
        %1522 = vmatprep.subr.mxu0 0.0
        %1523 = vmatpush1.msra.mxu0 0.0
        %1524 = vmatprep.subr.mxu0 0.0
        %1525 = vmatpush1.msra.mxu0 0.0
        %1526 = vmatprep.subr.mxu0 0.0
        %1527 = vmatpush1.msra.mxu0 0.0
        %1528 = vmatprep.subr.mxu0 0.0
        %1529 = vmatpush1.msra.mxu0 0.0
        %1530 = vmatprep.subr.mxu0 0.0
        %1531 = vmatpush1.msra.mxu0 0.0
        %1532 = vmatprep.subr.mxu0 0.0
        %1533 = vmatpush1.msra.mxu0 0.0
        %1534 = vmatprep.subr.mxu0 0.0
        %1535 = vmatpush1.msra.mxu0 0.0
        %1536 = vmatprep.subr.mxu0 0.0
        %1537 = vmatpush1.msra.mxu0 0.0
        %1538 = vmatprep.subr.mxu0 0.0
        %1539 = vmatpush1.msra.mxu0 0.0
        %1540 = vmatprep.subr.mxu0 0.0
        %1541 = vmatpush1.msra.mxu0 0.0
        %1542 = vmatprep.subr.mxu0 0.0
        %1543 = vmatpush1.msra.mxu0 0.0
        %1544 = vmatprep.subr.mxu0 0.0
        %1545 = vmatpush1.msra.mxu0 0.0
        %1546 = vmatprep.subr.mxu0 0.0
        %1547 = vmatpush1.msra.mxu0 0.0
        %1548 = vmatprep.subr.mxu0 0.0
        %1549 = vmatpush1.msra.mxu0 0.0
        %1550 = vmatprep.subr.mxu0 0.0
        %1551 = vmatpush1.msra.mxu0 0.0
        %1552 = vmatprep.subr.mxu0 0.0
        %1553 = vmatpush1.msra.mxu0 0.0
        %1554 = vmatprep.subr.mxu0 0.0
        %1555 = vmatpush1.msra.mxu0 0.0
        %1556 = vmatprep.subr.mxu0 0.0
        %1557 = vmatpush1.msra.mxu0 0.0
        %1558 = vmatprep.subr.mxu0 0.0
        %1559 = vmatpush1.msra.mxu0 0.0
        %1560 = vmatprep.subr.mxu0 0.0
        %1561 = vmatpush1.msra.mxu0 0.0
        %1562 = vmatprep.subr.mxu0 0.0
        %1563 = vmatpush1.msra.mxu0 0.0
        %1564 = vmatprep.subr.mxu0 0.0
        %1565 = vmatpush1.msra.mxu0 0.0
        %1566 = vmatprep.subr.mxu0 0.0
        %1567 = vmatpush1.msra.mxu0 0.0
        %1568 = vmatprep.subr.mxu0 0.0
        %1569 = vmatpush1.msra.mxu0 0.0
        %1570 = vmatprep.subr.mxu0 0.0
        %1571 = vmatpush1.msra.mxu0 0.0
        %1572 = vmatprep.subr.mxu0 0.0
        %1573 = vmatpush1.msra.mxu0 0.0
        %1574 = vmatprep.subr.mxu0 0.0
        %1575 = vmatpush1.msra.mxu0 0.0
        %1576 = vmatprep.mubr.f32.mxu0 0.0
        %1577 = vmatmul.mubr.f32.gmra.mrb[0].mxu0 %v1507
        %v1578 = vpop.f32.mrb[0].mxu0
        %v1579 = vadd.f32 0.0, %v1578
        %v1580 = vpop.f32.mrb[0].mxu0
        %1581 = vmatprep.mubr.f32.mxu0 0.0
        %1582 = vmatmul.mubr.f32.gmra.mrb[0].mxu0 %v1510
        %v1583 = vpop.f32.mrb[0].mxu0
        %v1584 = vadd.f32 0.0, %v1583
        %v1585 = vpop.f32.mrb[0].mxu0
        %1586 = vdwg.mxu0
        %s1587 = scalar_lea.vmem [#allocation10], 160
        %v1588 = vld [vmem:[%s1587] sm:$0xff]
        %v1589 = vld [vmem:[%s1587 + $0x8] sm:$0xff]
        %s1590 = scalar_lea.vmem [#allocation10], 176
        %v1591 = vld [vmem:[%s1590] sm:$0xff]
        %v1592 = vld [vmem:[%s1590 + $0x8] sm:$0xff]
        %1593 = vmatprep.subr.mxu0 0.0
        %1594 = vmatpush1.msra.mxu0 %v1591
        %1595 = vmatprep.subr.mxu0 0.0
        %1596 = vmatpush1.msra.mxu0 %v1592
        %1597 = vmatprep.subr.mxu0 0.0
        %1598 = vmatpush1.msra.mxu0 0.0
        %1599 = vmatprep.subr.mxu0 0.0
        %1600 = vmatpush1.msra.mxu0 0.0
        %1601 = vmatprep.subr.mxu0 0.0
        %1602 = vmatpush1.msra.mxu0 0.0
        %1603 = vmatprep.subr.mxu0 0.0
        %1604 = vmatpush1.msra.mxu0 0.0
        %1605 = vmatprep.subr.mxu0 0.0
        %1606 = vmatpush1.msra.mxu0 0.0
        %1607 = vmatprep.subr.mxu0 0.0
        %1608 = vmatpush1.msra.mxu0 0.0
        %1609 = vmatprep.subr.mxu0 0.0
        %1610 = vmatpush1.msra.mxu0 0.0
        %1611 = vmatprep.subr.mxu0 0.0
        %1612 = vmatpush1.msra.mxu0 0.0
        %1613 = vmatprep.subr.mxu0 0.0
        %1614 = vmatpush1.msra.mxu0 0.0
        %1615 = vmatprep.subr.mxu0 0.0
        %1616 = vmatpush1.msra.mxu0 0.0
        %1617 = vmatprep.subr.mxu0 0.0
        %1618 = vmatpush1.msra.mxu0 0.0
        %1619 = vmatprep.subr.mxu0 0.0
        %1620 = vmatpush1.msra.mxu0 0.0
        %1621 = vmatprep.subr.mxu0 0.0
        %1622 = vmatpush1.msra.mxu0 0.0
        %1623 = vmatprep.subr.mxu0 0.0
        %1624 = vmatpush1.msra.mxu0 0.0
        %1625 = vmatprep.subr.mxu0 0.0
        %1626 = vmatpush1.msra.mxu0 0.0
        %1627 = vmatprep.subr.mxu0 0.0
        %1628 = vmatpush1.msra.mxu0 0.0
        %1629 = vmatprep.subr.mxu0 0.0
        %1630 = vmatpush1.msra.mxu0 0.0
        %1631 = vmatprep.subr.mxu0 0.0
        %1632 = vmatpush1.msra.mxu0 0.0
        %1633 = vmatprep.subr.mxu0 0.0
        %1634 = vmatpush1.msra.mxu0 0.0
        %1635 = vmatprep.subr.mxu0 0.0
        %1636 = vmatpush1.msra.mxu0 0.0
        %1637 = vmatprep.subr.mxu0 0.0
        %1638 = vmatpush1.msra.mxu0 0.0
        %1639 = vmatprep.subr.mxu0 0.0
        %1640 = vmatpush1.msra.mxu0 0.0
        %1641 = vmatprep.subr.mxu0 0.0
        %1642 = vmatpush1.msra.mxu0 0.0
        %1643 = vmatprep.subr.mxu0 0.0
        %1644 = vmatpush1.msra.mxu0 0.0
        %1645 = vmatprep.subr.mxu0 0.0
        %1646 = vmatpush1.msra.mxu0 0.0
        %1647 = vmatprep.subr.mxu0 0.0
        %1648 = vmatpush1.msra.mxu0 0.0
        %1649 = vmatprep.subr.mxu0 0.0
        %1650 = vmatpush1.msra.mxu0 0.0
        %1651 = vmatprep.subr.mxu0 0.0
        %1652 = vmatpush1.msra.mxu0 0.0
        %1653 = vmatprep.subr.mxu0 0.0
        %1654 = vmatpush1.msra.mxu0 0.0
        %1655 = vmatprep.subr.mxu0 0.0
        %1656 = vmatpush1.msra.mxu0 0.0
        %1657 = vmatprep.mubr.f32.mxu0 0.0
        %1658 = vmatmul.mubr.f32.gmra.mrb[0].mxu0 %v1507
        %v1659 = vpop.f32.mrb[0].mxu0
        %v1660 = vadd.f32 0.0, %v1659
        %v1661 = vpop.f32.mrb[0].mxu0
        %1662 = vmatprep.mubr.f32.mxu0 0.0
        %1663 = vmatmul.mubr.f32.gmra.mrb[0].mxu0 %v1510
        %v1664 = vpop.f32.mrb[0].mxu0
        %v1665 = vadd.f32 0.0, %v1664
        %v1666 = vpop.f32.mrb[0].mxu0
        %1667 = vdwg.mxu0
        %1668 = vmatprep.subr.mxu0 0.0
        %1669 = vmatpush1.msra.mxu0 %v1579
        %1670 = vmatprep.subr.mxu0 0.0
        %1671 = vmatpush1.msra.mxu0 %v1584
        %1672 = vmatprep.subr.mxu0 0.0
        %1673 = vmatpush1.msra.mxu0 0.0
        %1674 = vmatprep.subr.mxu0 0.0
        %1675 = vmatpush1.msra.mxu0 0.0
        %1676 = vmatprep.subr.mxu0 0.0
        %1677 = vmatpush1.msra.mxu0 0.0
        %1678 = vmatprep.subr.mxu0 0.0
        %1679 = vmatpush1.msra.mxu0 0.0
        %1680 = vmatprep.subr.mxu0 0.0
        %1681 = vmatpush1.msra.mxu0 0.0
        %1682 = vmatprep.subr.mxu0 0.0
        %1683 = vmatpush1.msra.mxu0 0.0
        %1684 = vmatprep.subr.mxu0 0.0
        %1685 = vmatpush1.msra.mxu0 0.0
        %1686 = vmatprep.subr.mxu0 0.0
        %1687 = vmatpush1.msra.mxu0 0.0
        %1688 = vmatprep.subr.mxu0 0.0
        %1689 = vmatpush1.msra.mxu0 0.0
        %1690 = vmatprep.subr.mxu0 0.0
        %1691 = vmatpush1.msra.mxu0 0.0
        %1692 = vmatprep.subr.mxu0 0.0
        %1693 = vmatpush1.msra.mxu0 0.0
        %1694 = vmatprep.subr.mxu0 0.0
        %1695 = vmatpush1.msra.mxu0 0.0
        %1696 = vmatprep.subr.mxu0 0.0
        %1697 = vmatpush1.msra.mxu0 0.0
        %1698 = vmatprep.subr.mxu0 0.0
        %1699 = vmatpush1.msra.mxu0 0.0
        %1700 = vmatprep.subr.mxu0 0.0
        %1701 = vmatpush1.msra.mxu0 0.0
        %1702 = vmatprep.subr.mxu0 0.0
        %1703 = vmatpush1.msra.mxu0 0.0
        %1704 = vmatprep.subr.mxu0 0.0
        %1705 = vmatpush1.msra.mxu0 0.0
        %1706 = vmatprep.subr.mxu0 0.0
        %1707 = vmatpush1.msra.mxu0 0.0
        %1708 = vmatprep.subr.mxu0 0.0
        %1709 = vmatpush1.msra.mxu0 0.0
        %1710 = vmatprep.subr.mxu0 0.0
        %1711 = vmatpush1.msra.mxu0 0.0
        %1712 = vmatprep.subr.mxu0 0.0
        %1713 = vmatpush1.msra.mxu0 0.0
        %1714 = vmatprep.subr.mxu0 0.0
        %1715 = vmatpush1.msra.mxu0 0.0
        %1716 = vmatprep.subr.mxu0 0.0
        %1717 = vmatpush1.msra.mxu0 0.0
        %1718 = vmatprep.subr.mxu0 0.0
        %1719 = vmatpush1.msra.mxu0 0.0
        %1720 = vmatprep.subr.mxu0 0.0
        %1721 = vmatpush1.msra.mxu0 0.0
        %1722 = vmatprep.subr.mxu0 0.0
        %1723 = vmatpush1.msra.mxu0 0.0
        %1724 = vmatprep.subr.mxu0 0.0
        %1725 = vmatpush1.msra.mxu0 0.0
        %1726 = vmatprep.subr.mxu0 0.0
        %1727 = vmatpush1.msra.mxu0 0.0
        %1728 = vmatprep.subr.mxu0 0.0
        %1729 = vmatpush1.msra.mxu0 0.0
        %1730 = vmatprep.subr.mxu0 0.0
        %1731 = vmatpush1.msra.mxu0 0.0
        %1732 = vmatprep.mubr.f32.mxu0 0.0
        %1733 = vmatmul.mubr.f32.gmra.mrb[0].mxu0 %v475
        %v1734 = vpop.f32.mrb[0].mxu0
        %v1735 = vadd.f32 0.0, %v1734
        %v1736 = vpop.f32.mrb[0].mxu0
        %1737 = vmatprep.mubr.f32.mxu0 0.0
        %1738 = vmatmul.mubr.f32.gmra.mrb[0].mxu0 %v478
        %v1739 = vpop.f32.mrb[0].mxu0
        %v1740 = vadd.f32 0.0, %v1739
        %v1741 = vpop.f32.mrb[0].mxu0
        %1742 = vdwg.mxu0
        %1743 = vmatprep.subr.mxu0 0.0
        %1744 = vmatpush1.msra.mxu0 %v1588
        %1745 = vmatprep.subr.mxu0 0.0
        %1746 = vmatpush1.msra.mxu0 %v1589
        %1747 = vmatprep.subr.mxu0 0.0
        %1748 = vmatpush1.msra.mxu0 0.0
        %1749 = vmatprep.subr.mxu0 0.0
        %1750 = vmatpush1.msra.mxu0 0.0
        %1751 = vmatprep.subr.mxu0 0.0
        %1752 = vmatpush1.msra.mxu0 0.0
        %1753 = vmatprep.subr.mxu0 0.0
        %1754 = vmatpush1.msra.mxu0 0.0
        %1755 = vmatprep.subr.mxu0 0.0
        %1756 = vmatpush1.msra.mxu0 0.0
        %1757 = vmatprep.subr.mxu0 0.0
        %1758 = vmatpush1.msra.mxu0 0.0
        %1759 = vmatprep.subr.mxu0 0.0
        %1760 = vmatpush1.msra.mxu0 0.0
        %1761 = vmatprep.subr.mxu0 0.0
        %1762 = vmatpush1.msra.mxu0 0.0
        %1763 = vmatprep.subr.mxu0 0.0
        %1764 = vmatpush1.msra.mxu0 0.0
        %1765 = vmatprep.subr.mxu0 0.0
        %1766 = vmatpush1.msra.mxu0 0.0
        %1767 = vmatprep.subr.mxu0 0.0
        %1768 = vmatpush1.msra.mxu0 0.0
        %1769 = vmatprep.subr.mxu0 0.0
        %1770 = vmatpush1.msra.mxu0 0.0
        %1771 = vmatprep.subr.mxu0 0.0
        %1772 = vmatpush1.msra.mxu0 0.0
        %1773 = vmatprep.subr.mxu0 0.0
        %1774 = vmatpush1.msra.mxu0 0.0
        %1775 = vmatprep.subr.mxu0 0.0
        %1776 = vmatpush1.msra.mxu0 0.0
        %1777 = vmatprep.subr.mxu0 0.0
        %1778 = vmatpush1.msra.mxu0 0.0
        %1779 = vmatprep.subr.mxu0 0.0
        %1780 = vmatpush1.msra.mxu0 0.0
        %1781 = vmatprep.subr.mxu0 0.0
        %1782 = vmatpush1.msra.mxu0 0.0
        %1783 = vmatprep.subr.mxu0 0.0
        %1784 = vmatpush1.msra.mxu0 0.0
        %1785 = vmatprep.subr.mxu0 0.0
        %1786 = vmatpush1.msra.mxu0 0.0
        %1787 = vmatprep.subr.mxu0 0.0
        %1788 = vmatpush1.msra.mxu0 0.0
        %1789 = vmatprep.subr.mxu0 0.0
        %1790 = vmatpush1.msra.mxu0 0.0
        %1791 = vmatprep.subr.mxu0 0.0
        %1792 = vmatpush1.msra.mxu0 0.0
        %1793 = vmatprep.subr.mxu0 0.0
        %1794 = vmatpush1.msra.mxu0 0.0
        %1795 = vmatprep.subr.mxu0 0.0
        %1796 = vmatpush1.msra.mxu0 0.0
        %1797 = vmatprep.subr.mxu0 0.0
        %1798 = vmatpush1.msra.mxu0 0.0
        %1799 = vmatprep.subr.mxu0 0.0
        %1800 = vmatpush1.msra.mxu0 0.0
        %1801 = vmatprep.subr.mxu0 0.0
        %1802 = vmatpush1.msra.mxu0 0.0
        %1803 = vmatprep.subr.mxu0 0.0
        %1804 = vmatpush1.msra.mxu0 0.0
        %1805 = vmatprep.subr.mxu0 0.0
        %1806 = vmatpush1.msra.mxu0 0.0
        %1807 = vmatprep.mubr.f32.mxu0 0.0
        %1808 = vmatmul.mubr.f32.gmra.mrb[0].mxu0 %v1507
        %v1809 = vpop.f32.mrb[0].mxu0
        %v1810 = vadd.f32 %v1735, %v1809
        %v1811 = vpop.f32.mrb[0].mxu0
        %1812 = vmatprep.mubr.f32.mxu0 0.0
        %1813 = vmatmul.mubr.f32.gmra.mrb[0].mxu0 %v1510
        %v1814 = vpop.f32.mrb[0].mxu0
        %v1815 = vadd.f32 %v1740, %v1814
        %v1816 = vpop.f32.mrb[0].mxu0
        %1817 = vdwg.mxu0
        %1818 = vmatprep.subr.mxu0 0.0
        %1819 = vmatpush1.msra.mxu0 %v1660
        %1820 = vmatprep.subr.mxu0 0.0
        %1821 = vmatpush1.msra.mxu0 %v1665
        %1822 = vmatprep.subr.mxu0 0.0
        %1823 = vmatpush1.msra.mxu0 0.0
        %1824 = vmatprep.subr.mxu0 0.0
        %1825 = vmatpush1.msra.mxu0 0.0
        %1826 = vmatprep.subr.mxu0 0.0
        %1827 = vmatpush1.msra.mxu0 0.0
        %1828 = vmatprep.subr.mxu0 0.0
        %1829 = vmatpush1.msra.mxu0 0.0
        %1830 = vmatprep.subr.mxu0 0.0
        %1831 = vmatpush1.msra.mxu0 0.0
        %1832 = vmatprep.subr.mxu0 0.0
        %1833 = vmatpush1.msra.mxu0 0.0
        %1834 = vmatprep.subr.mxu0 0.0
        %1835 = vmatpush1.msra.mxu0 0.0
        %1836 = vmatprep.subr.mxu0 0.0
        %1837 = vmatpush1.msra.mxu0 0.0
        %1838 = vmatprep.subr.mxu0 0.0
        %1839 = vmatpush1.msra.mxu0 0.0
        %1840 = vmatprep.subr.mxu0 0.0
        %1841 = vmatpush1.msra.mxu0 0.0
        %1842 = vmatprep.subr.mxu0 0.0
        %1843 = vmatpush1.msra.mxu0 0.0
        %1844 = vmatprep.subr.mxu0 0.0
        %1845 = vmatpush1.msra.mxu0 0.0
        %1846 = vmatprep.subr.mxu0 0.0
        %1847 = vmatpush1.msra.mxu0 0.0
        %1848 = vmatprep.subr.mxu0 0.0
        %1849 = vmatpush1.msra.mxu0 0.0
        %1850 = vmatprep.subr.mxu0 0.0
        %1851 = vmatpush1.msra.mxu0 0.0
        %1852 = vmatprep.subr.mxu0 0.0
        %1853 = vmatpush1.msra.mxu0 0.0
        %1854 = vmatprep.subr.mxu0 0.0
        %1855 = vmatpush1.msra.mxu0 0.0
        %1856 = vmatprep.subr.mxu0 0.0
        %1857 = vmatpush1.msra.mxu0 0.0
        %1858 = vmatprep.subr.mxu0 0.0
        %1859 = vmatpush1.msra.mxu0 0.0
        %1860 = vmatprep.subr.mxu0 0.0
        %1861 = vmatpush1.msra.mxu0 0.0
        %1862 = vmatprep.subr.mxu0 0.0
        %1863 = vmatpush1.msra.mxu0 0.0
        %1864 = vmatprep.subr.mxu0 0.0
        %1865 = vmatpush1.msra.mxu0 0.0
        %1866 = vmatprep.subr.mxu0 0.0
        %1867 = vmatpush1.msra.mxu0 0.0
        %1868 = vmatprep.subr.mxu0 0.0
        %1869 = vmatpush1.msra.mxu0 0.0
        %1870 = vmatprep.subr.mxu0 0.0
        %1871 = vmatpush1.msra.mxu0 0.0
        %1872 = vmatprep.subr.mxu0 0.0
        %1873 = vmatpush1.msra.mxu0 0.0
        %1874 = vmatprep.subr.mxu0 0.0
        %1875 = vmatpush1.msra.mxu0 0.0
        %1876 = vmatprep.subr.mxu0 0.0
        %1877 = vmatpush1.msra.mxu0 0.0
        %1878 = vmatprep.subr.mxu0 0.0
        %1879 = vmatpush1.msra.mxu0 0.0
        %1880 = vmatprep.subr.mxu0 0.0
        %1881 = vmatpush1.msra.mxu0 0.0
        %1882 = vmatprep.mubr.f32.mxu0 0.0
        %1883 = vmatmul.mubr.f32.gmra.mrb[0].mxu0 %v631
        %v1884 = vpop.f32.mrb[0].mxu0
        %v1885 = vadd.f32 0.0, %v1884
        %v1886 = vpop.f32.mrb[0].mxu0
        %1887 = vmatprep.mubr.f32.mxu0 0.0
        %1888 = vmatmul.mubr.f32.gmra.mrb[0].mxu0 %v634
        %v1889 = vpop.f32.mrb[0].mxu0
        %v1890 = vadd.f32 0.0, %v1889
        %v1891 = vpop.f32.mrb[0].mxu0
        %1892 = vdwg.mxu0
        %v1893 = vadd.f32 %v1810, %v1885
        %v1894 = vadd.f32 %v1815, %v1890
        %v1895 = vmul.f32 %v1893, %v303
        %v1896 = vmul.f32 %v1894, %v304
        %1897 = vst.msk [vmem:[%s300] sm:$0xff] %vm311, %v1895
        %1898 = vst.msk [vmem:[%s300 + $0x8] sm:$0xff] %vm311, %v1896
        %s1899 = sand.u32 %s142, 1
        %s1900 = scalar_lea.sflag [#allocation4], %s1899
        %s1901 = sand.u32 %s142, 1
        %s1902 = smul.addr %s1901, 16
        %s1903 = scalar_lea.vmem [#allocation11], %s1902
        // Predicated region
        $region61: #{tpu_custom_call.1} parent=39 // pred_check
          %p1904 = pneg %p152
        $region62: #{tpu_custom_call.1} parent=39 // pred_check_branch
          %1906 = sbr.rel (%p1904) target = $region64
        $region63: #{tpu_custom_call.1} parent=39 // pred_region
          %s1908 = ssub.s32 256, 256
          %1909 = vsyncadd %s1900, %s1908
          %s1910 = smul.addr %s24, 2
          %s1911 = smul.addr %s1910, 128
          %s1912 = scalar_lea.hbm %s5, %s1911
          %s1913 = sshll.u32 %s1903, 4
          %s1914 = int_to_ptr.vmem [resolvable:$true] %s1913
          %1919 = dma.vmem_to_hbm [thread:$0]  %s1914, 256, %s1912, %s1900, 128, 128, 8
        $region64: #{tpu_custom_call.1} parent=39 // pred_fallthru
          _
      $region40: #{tpu_custom_call.1} parent=5 // pred_fallthru
        _
      %p1920 = scmp.le.s32.totalorder 2, %s19
      // Predicated region
      $region65: #{tpu_custom_call.1} parent=5 // pred_check
        %p1921 = pneg %p1920
      $region66: #{tpu_custom_call.1} parent=5 // pred_check_branch
        %1923 = sbr.rel (%p1921) target = $region68
      $region67: #{tpu_custom_call.1} parent=5 // pred_region
        %s1924 = ssub.s32 %s19, 2
        // Predicated region
        $region69: #{tpu_custom_call.1} parent=67 // pred_check
          %p1925 = pneg %p158
        $region70: #{tpu_custom_call.1} parent=67 // pred_check_branch
          %1927 = sbr.rel (%p1925) target = $region72
        $region71: #{tpu_custom_call.1} parent=67 // pred_region
          %s1928 = sand.u32 %s143, 1
          %s1929 = scalar_lea.sflag [#allocation4], %s1928
          %s1930 = sand.u32 %s143, 1
          %s1931 = smul.addr %s1930, 16
          %s1932 = scalar_lea.vmem [#allocation11], %s1931
          %1933 = dma.done %s1929, 256
        $region72: #{tpu_custom_call.1} parent=67 // pred_fallthru
          _
      $region68: #{tpu_custom_call.1} parent=5 // pred_fallthru
        _
    $region6: #{tpu_custom_call.1} parent=1 // loop_footer
      %s23 = sadd.s32 1, %s19
    $region7: #{tpu_custom_call.1} parent=1 // loop_footer_branch
      %18 = sbr.rel target = $region3
    $region8: #{tpu_custom_call.1} parent=1 // loop_exit
      _
    %1934 = vsyncpa [#allocation3], 1
    %s1935 = scalar_lea.sflag [#allocation3], 1
    %1936 = vsyncpa %s1935, 1
    %1937 = vsyncpa [#allocation6], 1
    %1938 = vsyncpa [#allocation9], 1
    %1939 = vsyncpa [#allocation4], 1
    %s1940 = scalar_lea.sflag [#allocation4], 1
    %1941 = vsyncpa %s1940, 1

</llo_original>
